<compile_context>
chip_gen: v5e
topology: v5e:2x2
jax: 0.10.0
libtpu: 0.0.40
codegen_flags: <defaults>
</compile_context>

<pallas_src>
import functools
import re

import jax
import jax.numpy as jnp
from jax.experimental import pallas as pl
from jax.experimental.pallas import tpu as pltpu

_MIB = 1024 * 1024


def _round_up(x, m):
    return ((x + m - 1) // m) * m


def _tpu_generation():
    """Best-effort TPU generation (5/6/7/...); None if it cannot be determined."""
    try:
        kind = jax.devices()[0].device_kind.lower()
        m = re.search(r"(\d+)", kind)
        if m:
            return int(m.group(1))
    except Exception:
        pass
    return None


def _stgcn_kernel(x_ref, w_ref, at_ref, beff_ref, o_ref, *, K, C_out, Vp, tm):
    """One row block of the fused 1x1-conv + graph contraction.

    x_ref   : (tm*Vp, C_in)     activations, channels on lanes
    w_ref   : (K, C_in, C_out)  conv weight per graph kernel (VMEM resident)
    at_ref  : (K, Vp, Vp)       at[k, w, v] = A[k, v, w], zero padded (resident)
    beff_ref: (Vp, C_out)       bias folded through A (resident)
    o_ref   : (tm, Vp, C_out)   output block, lane-dense, written once
    """
    x2 = x_ref[...]                                          # (tm*Vp, C_in)
    acc = jnp.zeros((tm, Vp, C_out), jnp.float32)

    for k in range(K):                                       # K is small; unrolled
        # 1x1 conv for graph kernel k: one clean 2-D MXU matmul.  w_ref[k] is a
        # free leading-dim index (never a lane-misaligned slice of a wide y).
        y_k = jnp.dot(x2, w_ref[k], preferred_element_type=jnp.float32)
        y_k3 = y_k.reshape(tm, Vp, C_out)                    # layout no-op (Vp % 8 == 0)

        # Graph contraction: acc[m, w, d] += sum_v A[k, v, w] * y_k[m, v, d]
        # Batched matmul with A^T broadcast over the row block: contraction on
        # lanes of the lhs / sublanes of the rhs (MXU native) and the result is
        # already in the lane-dense (m, w, d) store orientation -> no relayouts.
        a_b = jnp.broadcast_to(at_ref[k][None, :, :], (tm, Vp, Vp))
        acc = acc + jax.lax.dot_general(
            a_b, y_k3, (((2,), (1,)), ((0,), (0,))),
            preferred_element_type=jnp.float32)

    # Single store, bias (pre-folded through A) added once.
    o_ref[...] = (acc + beff_ref[...][None, :, :]).astype(o_ref.dtype)


def _auto_tm(M, Vp, C_in, C_out, K, in_itemsize, out_itemsize,
             budget_bytes, tm_cap, min_blocks):
    """Pick the row-block size tm from a tile-padding-aware VMEM model."""
    r128 = lambda n: _round_up(n, 128)   # lane padding
    r8 = lambda n: _round_up(n, 8)       # sublane padding

    # Operands with constant index_maps (pipeline still allocates 2 buffers).
    resident = 2 * (K * r8(C_in) * r128(C_out) * in_itemsize      # conv weight
                    + K * Vp * r128(Vp) * 4                       # A^T
                    + Vp * r128(C_out) * 4)                       # bias_eff

    # Tile-padded footprint per (n, t) row of a block.
    per_row = (2 * Vp * r128(C_in) * in_itemsize        # x block, double buffered
               + 2 * Vp * r128(C_out) * out_itemsize    # out block, double buffered
               + Vp * r128(C_out) * 4                   # f32 accumulator
               + 2 * Vp * r128(C_out) * 4               # live y_k (+ slack)
               + Vp * r128(Vp) * 4)                     # broadcast A_k^T

    avail = max(budget_bytes - resident, per_row * 8)
    tm = max(8, avail // per_row)
    tm = min(tm, tm_cap)
    if min_blocks > 1:
        # Guarantee several grid steps so megacore / dual-TC chips get work.
        tm = min(tm, max(8, pl.cdiv(M, min_blocks)))
    tm = max(1, min(tm, M))
    return int(tm)


def conv_temporal_graphical(x, A, conv_weight, conv_bias, kernel_size,
                            tm=None, compute_dtype=None, vmem_limit_bytes=None):
    """Pallas implementation of ConvTemporalGraphical.forward.

    x           : (N, C_in, T, V) float32 (NCHW, as in PyTorch)
    A           : (K, V, V)
    conv_weight : (K*C_out, C_in, 1, 1)
    conv_bias   : (K*C_out,) or None
    returns     : (N, C_out, T, V)
    """
    N, C_in, T, V = x.shape
    K = int(kernel_size)
    assert A.shape == (K, V, V), (A.shape, K, V)
    KC, wc_in, kh, kw = conv_weight.shape
    assert KC % K == 0 and wc_in == C_in
    # TODO(synk): general t_kernel_size / t_stride / t_padding not implemented.
    assert kh == 1 and kw == 1, "only the default 1x1 temporal conv is supported"
    C_out = KC // K
    out_dtype = x.dtype

    # Per-generation VMEM budget / tiling policy.
    gen = _tpu_generation()
    if gen is not None and gen >= 7:
        budget, default_vmem, tm_cap, min_blocks = 12 * _MIB, 40 * _MIB, 256, 4
    elif gen is not None:            # v4 / v5e / v6e: 128 MiB VMEM
        budget, default_vmem, tm_cap, min_blocks = 32 * _MIB, 96 * _MIB, 1024, 1
    else:
        budget, default_vmem, tm_cap, min_blocks = 16 * _MIB, 48 * _MIB, 256, 2
    if vmem_limit_bytes is None:
        vmem_limit_bytes = default_vmem

    in_dtype = jnp.dtype(compute_dtype) if compute_dtype is not None else jnp.dtype(x.dtype)

    Vp = _round_up(V, 8)
    M = N * T

    # conv weight (K*C_out, C_in, 1, 1) -> (K, C_in, C_out):
    #   w_t[k, c, d] = conv_weight[k*C_out + d, c, 0, 0]
    w_t = conv_weight[:, :, 0, 0].reshape(K, C_out, C_in).transpose(0, 2, 1)
    w_t = w_t.astype(in_dtype)

    # A (K, V, V) -> A^T, zero padded: at[k, w, v] = A[k, v, w]
    a_t = jnp.transpose(A.astype(jnp.float32), (0, 2, 1))
    a_t = jnp.pad(a_t, ((0, 0), (0, Vp - V), (0, Vp - V)))

    # Bias folded through the (linear) graph contraction:
    #   bias_eff[w, d] = sum_k bias[k*C_out + d] * sum_v A[k, v, w]
    if conv_bias is not None:
        bias_eff = jnp.einsum('kd,kw->wd',
                              conv_bias.reshape(K, C_out).astype(jnp.float32),
                              A.astype(jnp.float32).sum(axis=1))
    else:
        bias_eff = jnp.zeros((V, C_out), jnp.float32)
    bias_eff = jnp.pad(bias_eff, ((0, Vp - V), (0, 0)))

    # TODO(synk): these two wrapper HBM transposes vanish if the surrounding
    # model keeps activations channels-last.
    xr = x.transpose(0, 2, 3, 1)                              # (N, T, V, C_in)
    xr = jnp.pad(xr, ((0, 0), (0, 0), (0, Vp - V), (0, 0)))   # pad V -> Vp
    xr = xr.reshape(M, Vp, C_in).astype(in_dtype)

    if tm is None:
        tm = _auto_tm(M, Vp, C_in, C_out, K,
                      jnp.dtype(in_dtype).itemsize, jnp.dtype(out_dtype).itemsize,
                      budget, tm_cap, min_blocks)
    tm = int(max(1, min(tm, M)))
    num_blocks = pl.cdiv(M, tm)
    Mp = num_blocks * tm
    if Mp != M:
        xr = jnp.pad(xr, ((0, Mp - M), (0, 0), (0, 0)))       # padded rows dropped below
    x2d = xr.reshape(Mp * Vp, C_in)

    kernel = functools.partial(_stgcn_kernel, K=K, C_out=C_out, Vp=Vp, tm=tm)

    flops = 2 * M * V * C_in * K * C_out + 2 * M * K * C_out * V * V
    bytes_accessed = (x2d.size * x2d.dtype.itemsize
                      + w_t.size * w_t.dtype.itemsize
                      + a_t.size * 4 + bias_eff.size * 4
                      + Mp * Vp * C_out * jnp.dtype(out_dtype).itemsize)

    out = pl.pallas_call(
        kernel,
        out_shape=jax.ShapeDtypeStruct((Mp, Vp, C_out), out_dtype),
        grid_spec=pltpu.PrefetchScalarGridSpec(
            num_scalar_prefetch=0,
            grid=(num_blocks,),
            in_specs=[
                # Row block of activations (channels on lanes).
                pl.BlockSpec((tm * Vp, C_in), lambda i: (i, 0)),
                # Constant block index -> fetched once, VMEM resident.
                pl.BlockSpec((K, C_in, C_out), lambda i: (0, 0, 0)),
                pl.BlockSpec((K, Vp, Vp), lambda i: (0, 0, 0)),
                pl.BlockSpec((Vp, C_out), lambda i: (0, 0)),
            ],
            # Lane-dense output block: C_out on lanes, written once per block.
            out_specs=pl.BlockSpec((tm, Vp, C_out), lambda i: (i, 0, 0)),
        ),
        compiler_params=pltpu.CompilerParams(
            dimension_semantics=("parallel",),
            vmem_limit_bytes=int(vmem_limit_bytes)),
        cost_estimate=pl.CostEstimate(flops=int(flops), transcendentals=0,
                                      bytes_accessed=int(bytes_accessed)),
    )(x2d, w_t, a_t, bias_eff)

    # (Mp, Vp, C_out) -> (N, C_out, T, V)
    out = out[:M, :V, :].reshape(N, T, V, C_out).transpose(0, 3, 1, 2)
    return out


def _reference(x, A, conv_weight, conv_bias, K):
    """Plain-JAX reproduction of the PyTorch forward for verification."""
    N, C_in, T, V = x.shape
    C_out = conv_weight.shape[0] // K
    w = conv_weight[:, :, 0, 0]                               # (K*C_out, C_in)
    y = jnp.einsum('nctv,oc->notv', x, w)
    if conv_bias is not None:
        y = y + conv_bias[None, :, None, None]
    y = y.reshape(N, K, C_out, T, V)
    return jnp.einsum('nkctv,kvw->nctw', y, A)


if __name__ == "__main__":
    key = jax.random.PRNGKey(0)
    kx, ka, kw, kb = jax.random.split(key, 4)

    # Config 1: base small shapes (V already a multiple of 8).
    N, C_in, T, V = 2, 4, 16, 16
    C_out, K = 8, 3
    x = jax.random.normal(kx, (N, C_in, T, V), dtype=jnp.float32)
    A = jax.random.normal(ka, (K, V, V), dtype=jnp.float32)
    conv_weight = 0.1 * jax.random.normal(kw, (K * C_out, C_in, 1, 1),
                                          dtype=jnp.float32)
    conv_bias = 0.1 * jax.random.normal(kb, (K * C_out,), dtype=jnp.float32)

    out = jax.block_until_ready(
        conv_temporal_graphical(x, A, conv_weight, conv_bias, K))
    ref = _reference(x, A, conv_weight, conv_bias, K)
    assert out.shape == (N, C_out, T, V), out.shape
    max_err = float(jnp.max(jnp.abs(out - ref)))
    assert max_err < 1e-3, f"mismatch vs reference, max_err={max_err}"

    # Config 2: V not a multiple of 8 and N*T not divisible by tm
    # (exercises the vertex-padding and row-padding paths).
    N2, T2, V2 = 2, 7, 14
    x2 = jax.random.normal(kx, (N2, C_in, T2, V2), dtype=jnp.float32)
    A2 = jax.random.normal(ka, (K, V2, V2), dtype=jnp.float32)
    out2 = jax.block_until_ready(
        conv_temporal_graphical(x2, A2, conv_weight, conv_bias, K, tm=4))
    ref2 = _reference(x2, A2, conv_weight, conv_bias, K)
    assert out2.shape == (N2, C_out, T2, V2), out2.shape
    max_err2 = float(jnp.max(jnp.abs(out2 - ref2)))
    assert max_err2 < 1e-3, f"mismatch vs reference (padded), max_err={max_err2}"

    print("KERNEL_OK")
</pallas_src>

<mosaic_0001>
module attributes {stable_mosaic.version = 11 : i64} {
  func.func @_stgcn_kernel(%arg0: i32, %arg1: memref<256x4xf32, #tpu.memory_space<vmem>>, %arg2: memref<3x4x8xf32, #tpu.memory_space<vmem>>, %arg3: memref<3x16x16xf32, #tpu.memory_space<vmem>>, %arg4: memref<16x8xf32, #tpu.memory_space<vmem>>, %arg5: memref<16x16x8xf32, #tpu.memory_space<vmem>>) attributes {dimension_semantics = [#tpu.dimension_semantics<parallel>], iteration_bounds = array<i64: 2>, scalar_prefetch = 0 : i64, scratch_operands = 0 : i64, tpu.core_type = #tpu.core_type<tc>, window_params = [{transform_indices = @transform_0, window_bounds = array<i64: 256, 4>}, {pipeline_mode = #tpu.pipeline_mode<synchronous>, transform_indices = @transform_1, window_bounds = array<i64: 3, 4, 8>}, {pipeline_mode = #tpu.pipeline_mode<synchronous>, transform_indices = @transform_2, window_bounds = array<i64: 3, 16, 16>}, {pipeline_mode = #tpu.pipeline_mode<synchronous>, transform_indices = @transform_3, window_bounds = array<i64: 16, 8>}, {transform_indices = @transform_4, window_bounds = array<i64: 16, 16, 8>}]} {
    %c0 = arith.constant 0 : index
    %c0_0 = arith.constant 0 : index
    %0 = vector.load %arg1[%c0, %c0_0] : memref<256x4xf32, #tpu.memory_space<vmem>>, vector<256x4xf32>
    %cst = arith.constant 0.000000e+00 : f32
    %1 = vector.broadcast %cst : f32 to vector<16x16x8xf32>
    %c0_1 = arith.constant 0 : index
    %c0_2 = arith.constant 0 : index
    %c0_3 = arith.constant 0 : index
    %2 = vector.load %arg2[%c0_1, %c0_2, %c0_3] : memref<3x4x8xf32, #tpu.memory_space<vmem>>, vector<1x4x8xf32>
    %3 = vector.shape_cast %2 : vector<1x4x8xf32> to vector<4x8xf32>
    %cst_4 = arith.constant dense<0.000000e+00> : vector<256x8xf32>
    %4 = tpu.matmul %0, %3, %cst_4 {dimension_numbers = #tpu.dot_dimension_numbers<[1], [0], [0], [1], [0, 0, 1, 1], [], []>} : vector<256x4xf32>, vector<4x8xf32>, vector<256x8xf32> -> vector<256x8xf32>
    %5 = vector.shape_cast %4 : vector<256x8xf32> to vector<16x16x8xf32>
    %c0_5 = arith.constant 0 : index
    %c0_6 = arith.constant 0 : index
    %c0_7 = arith.constant 0 : index
    %6 = vector.load %arg3[%c0_5, %c0_6, %c0_7] : memref<3x16x16xf32, #tpu.memory_space<vmem>>, vector<1x16x16xf32>
    %7 = vector.shape_cast %6 : vector<1x16x16xf32> to vector<16x16xf32>
    %8 = vector.shape_cast %7 : vector<16x16xf32> to vector<1x16x16xf32>
    %9 = vector.shape_cast %8 : vector<1x16x16xf32> to vector<1x16x16xf32>
    %10 = vector.broadcast %9 : vector<1x16x16xf32> to vector<16x16x16xf32>
    %cst_8 = arith.constant dense<0.000000e+00> : vector<16x16x8xf32>
    %11 = tpu.matmul %10, %5, %cst_8 {dimension_numbers = #tpu.dot_dimension_numbers<[2], [1], [1], [2], [0, 0, 0, 1, 1, 2], [0], [0]>} : vector<16x16x16xf32>, vector<16x16x8xf32>, vector<16x16x8xf32> -> vector<16x16x8xf32>
    %12 = arith.addf %1, %11 : vector<16x16x8xf32>
    %c1 = arith.constant 1 : index
    %c0_9 = arith.constant 0 : index
    %c0_10 = arith.constant 0 : index
    %13 = vector.load %arg2[%c1, %c0_9, %c0_10] : memref<3x4x8xf32, #tpu.memory_space<vmem>>, vector<1x4x8xf32>
    %14 = vector.shape_cast %13 : vector<1x4x8xf32> to vector<4x8xf32>
    %cst_11 = arith.constant dense<0.000000e+00> : vector<256x8xf32>
    %15 = tpu.matmul %0, %14, %cst_11 {dimension_numbers = #tpu.dot_dimension_numbers<[1], [0], [0], [1], [0, 0, 1, 1], [], []>} : vector<256x4xf32>, vector<4x8xf32>, vector<256x8xf32> -> vector<256x8xf32>
    %16 = vector.shape_cast %15 : vector<256x8xf32> to vector<16x16x8xf32>
    %c1_12 = arith.constant 1 : index
    %c0_13 = arith.constant 0 : index
    %c0_14 = arith.constant 0 : index
    %17 = vector.load %arg3[%c1_12, %c0_13, %c0_14] : memref<3x16x16xf32, #tpu.memory_space<vmem>>, vector<1x16x16xf32>
    %18 = vector.shape_cast %17 : vector<1x16x16xf32> to vector<16x16xf32>
    %19 = vector.shape_cast %18 : vector<16x16xf32> to vector<1x16x16xf32>
    %20 = vector.shape_cast %19 : vector<1x16x16xf32> to vector<1x16x16xf32>
    %21 = vector.broadcast %20 : vector<1x16x16xf32> to vector<16x16x16xf32>
    %cst_15 = arith.constant dense<0.000000e+00> : vector<16x16x8xf32>
    %22 = tpu.matmul %21, %16, %cst_15 {dimension_numbers = #tpu.dot_dimension_numbers<[2], [1], [1], [2], [0, 0, 0, 1, 1, 2], [0], [0]>} : vector<16x16x16xf32>, vector<16x16x8xf32>, vector<16x16x8xf32> -> vector<16x16x8xf32>
    %23 = arith.addf %12, %22 : vector<16x16x8xf32>
    %c2 = arith.constant 2 : index
    %c0_16 = arith.constant 0 : index
    %c0_17 = arith.constant 0 : index
    %24 = vector.load %arg2[%c2, %c0_16, %c0_17] : memref<3x4x8xf32, #tpu.memory_space<vmem>>, vector<1x4x8xf32>
    %25 = vector.shape_cast %24 : vector<1x4x8xf32> to vector<4x8xf32>
    %cst_18 = arith.constant dense<0.000000e+00> : vector<256x8xf32>
    %26 = tpu.matmul %0, %25, %cst_18 {dimension_numbers = #tpu.dot_dimension_numbers<[1], [0], [0], [1], [0, 0, 1, 1], [], []>} : vector<256x4xf32>, vector<4x8xf32>, vector<256x8xf32> -> vector<256x8xf32>
    %27 = vector.shape_cast %26 : vector<256x8xf32> to vector<16x16x8xf32>
    %c2_19 = arith.constant 2 : index
    %c0_20 = arith.constant 0 : index
    %c0_21 = arith.constant 0 : index
    %28 = vector.load %arg3[%c2_19, %c0_20, %c0_21] : memref<3x16x16xf32, #tpu.memory_space<vmem>>, vector<1x16x16xf32>
    %29 = vector.shape_cast %28 : vector<1x16x16xf32> to vector<16x16xf32>
    %30 = vector.shape_cast %29 : vector<16x16xf32> to vector<1x16x16xf32>
    %31 = vector.shape_cast %30 : vector<1x16x16xf32> to vector<1x16x16xf32>
    %32 = vector.broadcast %31 : vector<1x16x16xf32> to vector<16x16x16xf32>
    %cst_22 = arith.constant dense<0.000000e+00> : vector<16x16x8xf32>
    %33 = tpu.matmul %32, %27, %cst_22 {dimension_numbers = #tpu.dot_dimension_numbers<[2], [1], [1], [2], [0, 0, 0, 1, 1, 2], [0], [0]>} : vector<16x16x16xf32>, vector<16x16x8xf32>, vector<16x16x8xf32> -> vector<16x16x8xf32>
    %34 = arith.addf %23, %33 : vector<16x16x8xf32>
    %c0_23 = arith.constant 0 : index
    %c0_24 = arith.constant 0 : index
    %35 = vector.load %arg4[%c0_23, %c0_24] : memref<16x8xf32, #tpu.memory_space<vmem>>, vector<16x8xf32>
    %36 = vector.shape_cast %35 : vector<16x8xf32> to vector<1x16x8xf32>
    %37 = vector.broadcast %36 : vector<1x16x8xf32> to vector<16x16x8xf32>
    %38 = arith.addf %34, %37 : vector<16x16x8xf32>
    %c0_25 = arith.constant 0 : index
    %c0_26 = arith.constant 0 : index
    %c0_27 = arith.constant 0 : index
    %39 = vector.load %arg5[%c0_25, %c0_26, %c0_27] : memref<16x16x8xf32, #tpu.memory_space<vmem>>, vector<16x16x8xf32>
    tpu.vector_store %arg5[%c0_25, %c0_26, %c0_27], %38 {strides = array<i32>} : memref<16x16x8xf32, #tpu.memory_space<vmem>>, vector<16x16x8xf32>,
    return
  }
  func.func @transform_0(%arg0: i32) -> (i32, i32) {
    %c0_i32 = arith.constant 0 : i32
    %c0_i32_0 = arith.constant 0 : i32
    return %arg0, %c0_i32 : i32, i32
  }
  func.func @transform_1(%arg0: i32) -> (i32, i32, i32) {
    %c0_i32 = arith.constant 0 : i32
    %c0_i32_0 = arith.constant 0 : i32
    %c0_i32_1 = arith.constant 0 : i32
    %c0_i32_2 = arith.constant 0 : i32
    return %c0_i32, %c0_i32_0, %c0_i32_1 : i32, i32, i32
  }
  func.func @transform_2(%arg0: i32) -> (i32, i32, i32) {
    %c0_i32 = arith.constant 0 : i32
    %c0_i32_0 = arith.constant 0 : i32
    %c0_i32_1 = arith.constant 0 : i32
    %c0_i32_2 = arith.constant 0 : i32
    return %c0_i32, %c0_i32_0, %c0_i32_1 : i32, i32, i32
  }
  func.func @transform_3(%arg0: i32) -> (i32, i32) {
    %c0_i32 = arith.constant 0 : i32
    %c0_i32_0 = arith.constant 0 : i32
    %c0_i32_1 = arith.constant 0 : i32
    return %c0_i32, %c0_i32_0 : i32, i32
  }
  func.func @transform_4(%arg0: i32) -> (i32, i32, i32) {
    %c0_i32 = arith.constant 0 : i32
    %c0_i32_0 = arith.constant 0 : i32
    %c0_i32_1 = arith.constant 0 : i32
    return %arg0, %c0_i32, %c0_i32_0 : i32, i32, i32
  }
}

</mosaic_0001>

<llo_original>
// kernel: tpu_custom_call.1
$region0: #{tpu_custom_call.1}
  #allocation0 [shape = 'u32[]', space=smem, size = 0x4, offset = 0x4, fixed_abs, tag = 'smem constant byte address 0x4 - core index']
  #allocation1 [shape = 'u32[72,128]{1,0:T(1,128)}', space=vmem, size = 0x9000, scoped, tag = 'internal scratch']
  %s0 = inlined_call_operand.vmem [shape: f32[512,4], index: 0, kind: input, shape index: {}]
  %s1 = inlined_call_operand.vmem [shape: f32[3,4,8], index: 1, kind: input, shape index: {}]
  %s2 = inlined_call_operand.vmem [shape: f32[3,16,16], index: 2, kind: input, shape index: {}]
  %s3 = inlined_call_operand.vmem [shape: f32[16,8], index: 3, kind: input, shape index: {}]
  %s4 = inlined_call_operand.vmem [shape: f32[32,16,8], index: 4, kind: output, shape index: {}]
  %s5 = sld [smem:[#allocation0]]
  $region49: #{tpu_custom_call.1} parent=0
    _
  %s7 = ssub.s32 1, %s5
  %s8 = scalar_select 0, %s7, %s5
  loop: start=0, step=1, limit=4
  $region2: #{tpu_custom_call.1} parent=0 // loop_pre_header
    _
  $region3: #{tpu_custom_call.1} parent=0 // loop_header
    %s10 = sphi 0, %s14
    %p11 = scmp.ge.s32.totalorder %s10, 4
    %s20 = sphi 0, %s22
    %s23 = sphi 0, %s20
    %s24 = sphi 0, %s23
    %s40 = sphi 0, %s24
    %s44 = sphi 0, %s44
    %s46 = sphi 0, %s44
    %s47 = sphi 0, %s46
    %s61 = sphi 0, %s47
    %s65 = sphi 0, %s65
    %s67 = sphi 0, %s65
    %s68 = sphi 0, %s67
    %s82 = sphi 0, %s68
    %s86 = sphi 0, %s86
    %s88 = sphi 0, %s86
    %s89 = sphi 0, %s88
    %s103 = sphi 0, %s89
    %s109 = sphi 0, %s111
    %s112 = sphi 0, %s109
    %s113 = sphi 0, %s112
    %s129 = sphi 0, %s113
  $region4: #{tpu_custom_call.1} parent=0 // loop_header_branch
    %13 = sbr.rel (%p11) target = $region8
  $region5: #{tpu_custom_call.1} parent=0 // loop_body
    %s15 = ssub.s32 %s10, 1
    %s16 = ssub.s32 %s10, 2
    %s17 = sadd.s32 %s10, 1
    %s18 = ssub.s32 %s10, %s17
    %p19 = scmp.eq.s32.totalorder %s18, 0
    %s21 = sadd.s32 %s20, 1
    %s22 = scalar_select %p19, %s20, %s21
    %p25 = pneg %p19
    %p26 = scmp.eq.s32.totalorder %s10, 1
    %p27 = por %p25, %p26
    %p28 = scmp.ne.s32.totalorder %s20, %s23
    %p29 = scmp.eq.s32.totalorder %s10, 0
    %p30 = por %p28, %p29
    %p31 = scmp.ne.s32.totalorder %s20, %s23
    %p32 = scmp.eq.s32.totalorder %s15, 1
    %p33 = por %p31, %p32
    %p34 = scmp.ne.s32.totalorder %s23, %s24
    %p35 = scmp.eq.s32.totalorder %s15, 0
    %p36 = por %p34, %p35
    %p37 = scmp.ne.s32.totalorder %s23, %s24
    %p38 = scmp.eq.s32.totalorder %s16, 1
    %p39 = por %p37, %p38
    %p41 = scmp.ne.s32.totalorder %s24, %s40
    %p42 = scmp.eq.s32.totalorder %s16, 0
    %p43 = por %p41, %p42
    %s45 = sadd.s32 %s44, 1
    %p48 = scmp.eq.s32.totalorder %s10, 1
    %p49 = scmp.ne.s32.totalorder %s44, %s46
    %p50 = scmp.eq.s32.totalorder %s10, 0
    %p51 = por %p49, %p50
    %p52 = scmp.ne.s32.totalorder %s44, %s46
    %p53 = scmp.eq.s32.totalorder %s15, 1
    %p54 = por %p52, %p53
    %p55 = scmp.ne.s32.totalorder %s46, %s47
    %p56 = scmp.eq.s32.totalorder %s15, 0
    %p57 = por %p55, %p56
    %p58 = scmp.ne.s32.totalorder %s46, %s47
    %p59 = scmp.eq.s32.totalorder %s16, 1
    %p60 = por %p58, %p59
    %p62 = scmp.ne.s32.totalorder %s47, %s61
    %p63 = scmp.eq.s32.totalorder %s16, 0
    %p64 = por %p62, %p63
    %s66 = sadd.s32 %s65, 1
    %p69 = scmp.eq.s32.totalorder %s10, 1
    %p70 = scmp.ne.s32.totalorder %s65, %s67
    %p71 = scmp.eq.s32.totalorder %s10, 0
    %p72 = por %p70, %p71
    %p73 = scmp.ne.s32.totalorder %s65, %s67
    %p74 = scmp.eq.s32.totalorder %s15, 1
    %p75 = por %p73, %p74
    %p76 = scmp.ne.s32.totalorder %s67, %s68
    %p77 = scmp.eq.s32.totalorder %s15, 0
    %p78 = por %p76, %p77
    %p79 = scmp.ne.s32.totalorder %s67, %s68
    %p80 = scmp.eq.s32.totalorder %s16, 1
    %p81 = por %p79, %p80
    %p83 = scmp.ne.s32.totalorder %s68, %s82
    %p84 = scmp.eq.s32.totalorder %s16, 0
    %p85 = por %p83, %p84
    %s87 = sadd.s32 %s86, 1
    %p90 = scmp.eq.s32.totalorder %s10, 1
    %p91 = scmp.ne.s32.totalorder %s86, %s88
    %p92 = scmp.eq.s32.totalorder %s10, 0
    %p93 = por %p91, %p92
    %p94 = scmp.ne.s32.totalorder %s86, %s88
    %p95 = scmp.eq.s32.totalorder %s15, 1
    %p96 = por %p94, %p95
    %p97 = scmp.ne.s32.totalorder %s88, %s89
    %p98 = scmp.eq.s32.totalorder %s15, 0
    %p99 = por %p97, %p98
    %p100 = scmp.ne.s32.totalorder %s88, %s89
    %p101 = scmp.eq.s32.totalorder %s16, 1
    %p102 = por %p100, %p101
    %p104 = scmp.ne.s32.totalorder %s89, %s103
    %p105 = scmp.eq.s32.totalorder %s16, 0
    %p106 = por %p104, %p105
    %s107 = ssub.s32 %s10, %s17
    %p108 = scmp.eq.s32.totalorder %s107, 0
    %s110 = sadd.s32 %s109, 1
    %s111 = scalar_select %p108, %s109, %s110
    %p114 = pneg %p108
    %p115 = scmp.eq.s32.totalorder %s10, 1
    %p116 = por %p114, %p115
    %p117 = scmp.ne.s32.totalorder %s109, %s112
    %p118 = scmp.eq.s32.totalorder %s10, 0
    %p119 = por %p117, %p118
    %p120 = scmp.ne.s32.totalorder %s109, %s112
    %p121 = scmp.eq.s32.totalorder %s15, 1
    %p122 = por %p120, %p121
    %p123 = scmp.ne.s32.totalorder %s112, %s113
    %p124 = scmp.eq.s32.totalorder %s15, 0
    %p125 = por %p123, %p124
    %p126 = scmp.ne.s32.totalorder %s112, %s113
    %p127 = scmp.eq.s32.totalorder %s16, 1
    %p128 = por %p126, %p127
    %p130 = scmp.ne.s32.totalorder %s113, %s129
    %p131 = scmp.eq.s32.totalorder %s16, 0
    %p132 = por %p130, %p131
    %p133 = scmp.le.s32.totalorder 1, %s10
    %p134 = scmp.lt.s32.totalorder %s10, 3
    %p135 = pnand %p133, %p134
    %p136 = pneg %p135
    // Predicated region
    $region9: #{tpu_custom_call.1} parent=5 // pred_check
      _
    $region10: #{tpu_custom_call.1} parent=5 // pred_check_branch
      %138 = sbr.rel (%p135) target = $region12
    $region11: #{tpu_custom_call.1} parent=5 // pred_region
      %s139 = ssub.s32 %s10, 1
      // Predicated region
      $region13: #{tpu_custom_call.1} parent=11 // pred_check
        %p140 = pneg %p57
      $region14: #{tpu_custom_call.1} parent=11 // pred_check_branch
        %142 = sbr.rel (%p140) target = $region16
      $region15: #{tpu_custom_call.1} parent=11 // pred_region
        _
      $region16: #{tpu_custom_call.1} parent=11 // pred_fallthru
        _
      // Predicated region
      $region17: #{tpu_custom_call.1} parent=11 // pred_check
        %p143 = pneg %p78
      $region18: #{tpu_custom_call.1} parent=11 // pred_check_branch
        %145 = sbr.rel (%p143) target = $region20
      $region19: #{tpu_custom_call.1} parent=11 // pred_region
        _
      $region20: #{tpu_custom_call.1} parent=11 // pred_fallthru
        _
      // Predicated region
      $region21: #{tpu_custom_call.1} parent=11 // pred_check
        %p146 = pneg %p99
      $region22: #{tpu_custom_call.1} parent=11 // pred_check_branch
        %148 = sbr.rel (%p146) target = $region24
      $region23: #{tpu_custom_call.1} parent=11 // pred_region
        _
      $region24: #{tpu_custom_call.1} parent=11 // pred_fallthru
        _
    $region12: #{tpu_custom_call.1} parent=5 // pred_fallthru
      _
    %p149 = scmp.lt.s32.totalorder %s10, 2
    // Predicated region
    $region25: #{tpu_custom_call.1} parent=5 // pred_check
      %p150 = pneg %p149
    $region26: #{tpu_custom_call.1} parent=5 // pred_check_branch
      %152 = sbr.rel (%p150) target = $region28
    $region27: #{tpu_custom_call.1} parent=5 // pred_region
      // Predicated region
      $region29: #{tpu_custom_call.1} parent=27 // pred_check
        %p153 = pneg %p30
      $region30: #{tpu_custom_call.1} parent=27 // pred_check_branch
        %155 = sbr.rel (%p153) target = $region32
      $region31: #{tpu_custom_call.1} parent=27 // pred_region
        %s156 = smul.u32 32, %s10
        %p157 = scmp.lt.s32.totalorder %s156, 63
        %s158 = scalar_select %p157, %s156, 63
        %s159 = smul.addr %s158, 8
        %s160 = scalar_lea.vmem %s0, %s159
        %s161 = smul.u32 32, %s10
      $region32: #{tpu_custom_call.1} parent=27 // pred_fallthru
        _
    $region28: #{tpu_custom_call.1} parent=5 // pred_fallthru
      _
    %p162 = scmp.le.s32.totalorder 1, %s10
    %p163 = scmp.lt.s32.totalorder %s10, 3
    %p164 = pnand %p162, %p163
    %p165 = pneg %p164
    // Predicated region
    $region33: #{tpu_custom_call.1} parent=5 // pred_check
      _
    $region34: #{tpu_custom_call.1} parent=5 // pred_check_branch
      %167 = sbr.rel (%p164) target = $region36
    $region35: #{tpu_custom_call.1} parent=5 // pred_region
      %s168 = ssub.s32 %s10, 1
      %s169 = smul.u32 32, %s15
      %p170 = scmp.lt.s32.totalorder %s169, 63
      %s171 = scalar_select %p170, %s169, 63
      %s172 = smul.addr %s171, 8
      %s173 = scalar_lea.vmem %s0, %s172
      %p174 = pneg %p36
      %p175 = pneg %p33
      %p176 = pneg %p57
      %p177 = pneg %p54
      %p178 = pneg %p78
      %p179 = pneg %p75
      %p180 = pneg %p99
      %p181 = pneg %p96
      %p182 = pneg %p125
      %p183 = pneg %p122
      %s184 = smul.u32 16, %s15
      %p185 = scmp.lt.s32.totalorder %s184, 31
      %s186 = scalar_select %p185, %s184, 31
      %s187 = smul.addr %s186, 2
      %s188 = smul.addr %s187, 8
      %s189 = scalar_lea.vmem %s4, %s188
      %s190 = smul.u32 32, %s15
      %p191 = scmp.lt.s32.totalorder %s190, 63
      %s192 = scalar_select %p191, %s190, 63
      %s193 = smul.addr %s192, 8
      %s194 = scalar_lea.vmem %s0, %s193
      %s195 = smul.u32 32, %s15
      %s196 = smul.u32 16, %s15
      %p197 = scmp.lt.s32.totalorder %s196, 31
      %s198 = scalar_select %p197, %s196, 31
      %s199 = smul.addr %s198, 2
      %s200 = smul.addr %s199, 8
      %s201 = scalar_lea.vmem %s4, %s200
      %s202 = smul.u32 16, %s15
      %v203 = vld [vmem:[%s194] sm:$0xff]
      %v204 = vld [vmem:[%s194 + $0x8] sm:$0xff]
      %v205 = vld [vmem:[%s194 + $0x10] sm:$0xff]
      %v206 = vld [vmem:[%s194 + $0x18] sm:$0xff]
      %v207 = vld [vmem:[%s194 + $0x20] sm:$0xff]
      %v208 = vld [vmem:[%s194 + $0x28] sm:$0xff]
      %v209 = vld [vmem:[%s194 + $0x30] sm:$0xff]
      %v210 = vld [vmem:[%s194 + $0x38] sm:$0xff]
      %v211 = vld [vmem:[%s194 + $0x40] sm:$0xff]
      %v212 = vld [vmem:[%s194 + $0x48] sm:$0xff]
      %v213 = vld [vmem:[%s194 + $0x50] sm:$0xff]
      %v214 = vld [vmem:[%s194 + $0x58] sm:$0xff]
      %v215 = vld [vmem:[%s194 + $0x60] sm:$0xff]
      %v216 = vld [vmem:[%s194 + $0x68] sm:$0xff]
      %v217 = vld [vmem:[%s194 + $0x70] sm:$0xff]
      %v218 = vld [vmem:[%s194 + $0x78] sm:$0xff]
      %v219 = vld [vmem:[%s194 + $0x80] sm:$0xff]
      %v220 = vld [vmem:[%s194 + $0x88] sm:$0xff]
      %v221 = vld [vmem:[%s194 + $0x90] sm:$0xff]
      %v222 = vld [vmem:[%s194 + $0x98] sm:$0xff]
      %v223 = vld [vmem:[%s194 + $0xa0] sm:$0xff]
      %v224 = vld [vmem:[%s194 + $0xa8] sm:$0xff]
      %v225 = vld [vmem:[%s194 + $0xb0] sm:$0xff]
      %v226 = vld [vmem:[%s194 + $0xb8] sm:$0xff]
      %v227 = vld [vmem:[%s194 + $0xc0] sm:$0xff]
      %v228 = vld [vmem:[%s194 + $0xc8] sm:$0xff]
      %v229 = vld [vmem:[%s194 + $0xd0] sm:$0xff]
      %v230 = vld [vmem:[%s194 + $0xd8] sm:$0xff]
      %v231 = vld [vmem:[%s194 + $0xe0] sm:$0xff]
      %v232 = vld [vmem:[%s194 + $0xe8] sm:$0xff]
      %v233 = vld [vmem:[%s194 + $0xf0] sm:$0xff]
      %v234 = vld [vmem:[%s194 + $0xf8] sm:$0xff]
      %v235 = vld [vmem:[%s1] sm:$0xf]
      %vm236 = vcmask 31744
      %v238 = vsel %vm236, %v203, 0
      %v241 = vsel %vm236, %v204, 0
      %v244 = vsel %vm236, %v205, 0
      %v247 = vsel %vm236, %v206, 0
      %v250 = vsel %vm236, %v207, 0
      %v253 = vsel %vm236, %v208, 0
      %v256 = vsel %vm236, %v209, 0
      %v259 = vsel %vm236, %v210, 0
      %v262 = vsel %vm236, %v211, 0
      %v265 = vsel %vm236, %v212, 0
      %v268 = vsel %vm236, %v213, 0
      %v271 = vsel %vm236, %v214, 0
      %v274 = vsel %vm236, %v215, 0
      %v277 = vsel %vm236, %v216, 0
      %v280 = vsel %vm236, %v217, 0
      %v283 = vsel %vm236, %v218, 0
      %v286 = vsel %vm236, %v219, 0
      %v289 = vsel %vm236, %v220, 0
      %v292 = vsel %vm236, %v221, 0
      %v295 = vsel %vm236, %v222, 0
      %v298 = vsel %vm236, %v223, 0
      %v301 = vsel %vm236, %v224, 0
      %v304 = vsel %vm236, %v225, 0
      %v307 = vsel %vm236, %v226, 0
      %v310 = vsel %vm236, %v227, 0
      %v313 = vsel %vm236, %v228, 0
      %v316 = vsel %vm236, %v229, 0
      %v319 = vsel %vm236, %v230, 0
      %v322 = vsel %vm236, %v231, 0
      %v325 = vsel %vm236, %v232, 0
      %v328 = vsel %vm236, %v233, 0
      %v331 = vsel %vm236, %v234, 0
      %vm333 = vcmask 1043456
      %v335 = vsel %vm333, %v235, 0
      %337 = vmatpush.msra.mxu0 0.0
      %338 = vmatpush.msra.mxu0 0.0
      %339 = vmatpush.msra.mxu0 0.0
      %340 = vmatpush.msra.mxu0 0.0
      %341 = vmatpush.msra.mxu0 0.0
      %342 = vmatpush.msra.mxu0 0.0
      %343 = vmatpush.msra.mxu0 0.0
      %344 = vmatpush.msra.mxu0 0.0
      %345 = vmatpush.msra.mxu0 0.0
      %346 = vmatpush.msra.mxu0 0.0
      %347 = vmatpush.msra.mxu0 0.0
      %348 = vmatpush.msra.mxu0 0.0
      %349 = vmatpush.msra.mxu0 0.0
      %350 = vmatpush.msra.mxu0 0.0
      %351 = vmatpush.msra.mxu0 0.0
      %352 = vmatpush.msra.mxu0 %v335
      %353 = vmatmul.f32.gmra.mxu0 %v238
      %v354 = vpop.f32.mrf.mxu0
      %v355 = vadd.f32 0.0, %v354
      %356 = vmatmul.f32.gmra.mxu0 %v241
      %v357 = vpop.f32.mrf.mxu0
      %v358 = vadd.f32 0.0, %v357
      %359 = vmatmul.f32.gmra.mxu0 %v244
      %v360 = vpop.f32.mrf.mxu0
      %v361 = vadd.f32 0.0, %v360
      %362 = vmatmul.f32.gmra.mxu0 %v247
      %v363 = vpop.f32.mrf.mxu0
      %v364 = vadd.f32 0.0, %v363
      %365 = vmatmul.f32.gmra.mxu0 %v250
      %v366 = vpop.f32.mrf.mxu0
      %v367 = vadd.f32 0.0, %v366
      %368 = vmatmul.f32.gmra.mxu0 %v253
      %v369 = vpop.f32.mrf.mxu0
      %v370 = vadd.f32 0.0, %v369
      %371 = vmatmul.f32.gmra.mxu0 %v256
      %v372 = vpop.f32.mrf.mxu0
      %v373 = vadd.f32 0.0, %v372
      %374 = vmatmul.f32.gmra.mxu0 %v259
      %v375 = vpop.f32.mrf.mxu0
      %v376 = vadd.f32 0.0, %v375
      %377 = vmatmul.f32.gmra.mxu0 %v262
      %v378 = vpop.f32.mrf.mxu0
      %v379 = vadd.f32 0.0, %v378
      %380 = vmatmul.f32.gmra.mxu0 %v265
      %v381 = vpop.f32.mrf.mxu0
      %v382 = vadd.f32 0.0, %v381
      %383 = vmatmul.f32.gmra.mxu0 %v268
      %v384 = vpop.f32.mrf.mxu0
      %v385 = vadd.f32 0.0, %v384
      %386 = vmatmul.f32.gmra.mxu0 %v271
      %v387 = vpop.f32.mrf.mxu0
      %v388 = vadd.f32 0.0, %v387
      %389 = vmatmul.f32.gmra.mxu0 %v274
      %v390 = vpop.f32.mrf.mxu0
      %v391 = vadd.f32 0.0, %v390
      %392 = vmatmul.f32.gmra.mxu0 %v277
      %v393 = vpop.f32.mrf.mxu0
      %v394 = vadd.f32 0.0, %v393
      %395 = vmatmul.f32.gmra.mxu0 %v280
      %v396 = vpop.f32.mrf.mxu0
      %v397 = vadd.f32 0.0, %v396
      %398 = vmatmul.f32.gmra.mxu0 %v283
      %v399 = vpop.f32.mrf.mxu0
      %v400 = vadd.f32 0.0, %v399
      %401 = vmatmul.f32.gmra.mxu0 %v286
      %v402 = vpop.f32.mrf.mxu0
      %v403 = vadd.f32 0.0, %v402
      %404 = vmatmul.f32.gmra.mxu0 %v289
      %v405 = vpop.f32.mrf.mxu0
      %v406 = vadd.f32 0.0, %v405
      %407 = vmatmul.f32.gmra.mxu0 %v292
      %v408 = vpop.f32.mrf.mxu0
      %v409 = vadd.f32 0.0, %v408
      %410 = vmatmul.f32.gmra.mxu0 %v295
      %v411 = vpop.f32.mrf.mxu0
      %v412 = vadd.f32 0.0, %v411
      %413 = vmatmul.f32.gmra.mxu0 %v298
      %v414 = vpop.f32.mrf.mxu0
      %v415 = vadd.f32 0.0, %v414
      %416 = vmatmul.f32.gmra.mxu0 %v301
      %v417 = vpop.f32.mrf.mxu0
      %v418 = vadd.f32 0.0, %v417
      %419 = vmatmul.f32.gmra.mxu0 %v304
      %v420 = vpop.f32.mrf.mxu0
      %v421 = vadd.f32 0.0, %v420
      %422 = vmatmul.f32.gmra.mxu0 %v307
      %v423 = vpop.f32.mrf.mxu0
      %v424 = vadd.f32 0.0, %v423
      %425 = vmatmul.f32.gmra.mxu0 %v310
      %v426 = vpop.f32.mrf.mxu0
      %v427 = vadd.f32 0.0, %v426
      %428 = vmatmul.f32.gmra.mxu0 %v313
      %v429 = vpop.f32.mrf.mxu0
      %v430 = vadd.f32 0.0, %v429
      %431 = vmatmul.f32.gmra.mxu0 %v316
      %v432 = vpop.f32.mrf.mxu0
      %v433 = vadd.f32 0.0, %v432
      %434 = vmatmul.f32.gmra.mxu0 %v319
      %v435 = vpop.f32.mrf.mxu0
      %v436 = vadd.f32 0.0, %v435
      %437 = vmatmul.f32.gmra.mxu0 %v322
      %v438 = vpop.f32.mrf.mxu0
      %v439 = vadd.f32 0.0, %v438
      %440 = vmatmul.f32.gmra.mxu0 %v325
      %v441 = vpop.f32.mrf.mxu0
      %v442 = vadd.f32 0.0, %v441
      %443 = vmatmul.f32.gmra.mxu0 %v328
      %v444 = vpop.f32.mrf.mxu0
      %v445 = vadd.f32 0.0, %v444
      %446 = vmatmul.f32.gmra.mxu0 %v331
      %v447 = vpop.f32.mrf.mxu0
      %v448 = vadd.f32 0.0, %v447
      %449 = vdwg.mxu0
      %v450 = vld [vmem:[%s2] sm:$0xff]
      %v451 = vld [vmem:[%s2 + $0x8] sm:$0xff]
      %s452 = scalar_lea.vmem %s1, 4
      %v453 = vld [vmem:[%s452] sm:$0xf]
      %v455 = vsel %vm333, %v453, 0
      %457 = vmatpush.msra.mxu0 0.0
      %458 = vmatpush.msra.mxu0 0.0
      %459 = vmatpush.msra.mxu0 0.0
      %460 = vmatpush.msra.mxu0 0.0
      %461 = vmatpush.msra.mxu0 0.0
      %462 = vmatpush.msra.mxu0 0.0
      %463 = vmatpush.msra.mxu0 0.0
      %464 = vmatpush.msra.mxu0 0.0
      %465 = vmatpush.msra.mxu0 0.0
      %466 = vmatpush.msra.mxu0 0.0
      %467 = vmatpush.msra.mxu0 0.0
      %468 = vmatpush.msra.mxu0 0.0
      %469 = vmatpush.msra.mxu0 0.0
      %470 = vmatpush.msra.mxu0 0.0
      %471 = vmatpush.msra.mxu0 0.0
      %472 = vmatpush.msra.mxu0 %v455
      %473 = vmatmul.f32.gmra.mxu0 %v238
      %v474 = vpop.f32.mrf.mxu0
      %v475 = vadd.f32 0.0, %v474
      %476 = vmatmul.f32.gmra.mxu0 %v241
      %v477 = vpop.f32.mrf.mxu0
      %v478 = vadd.f32 0.0, %v477
      %479 = vmatmul.f32.gmra.mxu0 %v244
      %v480 = vpop.f32.mrf.mxu0
      %v481 = vadd.f32 0.0, %v480
      %482 = vmatmul.f32.gmra.mxu0 %v247
      %v483 = vpop.f32.mrf.mxu0
      %v484 = vadd.f32 0.0, %v483
      %485 = vmatmul.f32.gmra.mxu0 %v250
      %v486 = vpop.f32.mrf.mxu0
      %v487 = vadd.f32 0.0, %v486
      %488 = vmatmul.f32.gmra.mxu0 %v253
      %v489 = vpop.f32.mrf.mxu0
      %v490 = vadd.f32 0.0, %v489
      %491 = vmatmul.f32.gmra.mxu0 %v256
      %v492 = vpop.f32.mrf.mxu0
      %v493 = vadd.f32 0.0, %v492
      %494 = vmatmul.f32.gmra.mxu0 %v259
      %v495 = vpop.f32.mrf.mxu0
      %v496 = vadd.f32 0.0, %v495
      %497 = vmatmul.f32.gmra.mxu0 %v262
      %v498 = vpop.f32.mrf.mxu0
      %v499 = vadd.f32 0.0, %v498
      %500 = vmatmul.f32.gmra.mxu0 %v265
      %v501 = vpop.f32.mrf.mxu0
      %v502 = vadd.f32 0.0, %v501
      %503 = vmatmul.f32.gmra.mxu0 %v268
      %v504 = vpop.f32.mrf.mxu0
      %v505 = vadd.f32 0.0, %v504
      %506 = vmatmul.f32.gmra.mxu0 %v271
      %v507 = vpop.f32.mrf.mxu0
      %v508 = vadd.f32 0.0, %v507
      %509 = vmatmul.f32.gmra.mxu0 %v274
      %v510 = vpop.f32.mrf.mxu0
      %v511 = vadd.f32 0.0, %v510
      %512 = vmatmul.f32.gmra.mxu0 %v277
      %v513 = vpop.f32.mrf.mxu0
      %v514 = vadd.f32 0.0, %v513
      %515 = vmatmul.f32.gmra.mxu0 %v280
      %v516 = vpop.f32.mrf.mxu0
      %v517 = vadd.f32 0.0, %v516
      %518 = vmatmul.f32.gmra.mxu0 %v283
      %v519 = vpop.f32.mrf.mxu0
      %v520 = vadd.f32 0.0, %v519
      %521 = vmatmul.f32.gmra.mxu0 %v286
      %v522 = vpop.f32.mrf.mxu0
      %v523 = vadd.f32 0.0, %v522
      %524 = vmatmul.f32.gmra.mxu0 %v289
      %v525 = vpop.f32.mrf.mxu0
      %v526 = vadd.f32 0.0, %v525
      %527 = vmatmul.f32.gmra.mxu0 %v292
      %v528 = vpop.f32.mrf.mxu0
      %v529 = vadd.f32 0.0, %v528
      %530 = vmatmul.f32.gmra.mxu0 %v295
      %v531 = vpop.f32.mrf.mxu0
      %v532 = vadd.f32 0.0, %v531
      %533 = vmatmul.f32.gmra.mxu0 %v298
      %v534 = vpop.f32.mrf.mxu0
      %v535 = vadd.f32 0.0, %v534
      %536 = vmatmul.f32.gmra.mxu0 %v301
      %v537 = vpop.f32.mrf.mxu0
      %v538 = vadd.f32 0.0, %v537
      %539 = vmatmul.f32.gmra.mxu0 %v304
      %v540 = vpop.f32.mrf.mxu0
      %v541 = vadd.f32 0.0, %v540
      %542 = vmatmul.f32.gmra.mxu0 %v307
      %v543 = vpop.f32.mrf.mxu0
      %v544 = vadd.f32 0.0, %v543
      %545 = vmatmul.f32.gmra.mxu0 %v310
      %v546 = vpop.f32.mrf.mxu0
      %v547 = vadd.f32 0.0, %v546
      %548 = vmatmul.f32.gmra.mxu0 %v313
      %v549 = vpop.f32.mrf.mxu0
      %v550 = vadd.f32 0.0, %v549
      %551 = vmatmul.f32.gmra.mxu0 %v316
      %v552 = vpop.f32.mrf.mxu0
      %v553 = vadd.f32 0.0, %v552
      %554 = vmatmul.f32.gmra.mxu0 %v319
      %v555 = vpop.f32.mrf.mxu0
      %v556 = vadd.f32 0.0, %v555
      %557 = vmatmul.f32.gmra.mxu0 %v322
      %v558 = vpop.f32.mrf.mxu0
      %v559 = vadd.f32 0.0, %v558
      %560 = vmatmul.f32.gmra.mxu0 %v325
      %v561 = vpop.f32.mrf.mxu0
      %v562 = vadd.f32 0.0, %v561
      %563 = vmatmul.f32.gmra.mxu0 %v328
      %v564 = vpop.f32.mrf.mxu0
      %v565 = vadd.f32 0.0, %v564
      %566 = vmatmul.f32.gmra.mxu0 %v331
      %v567 = vpop.f32.mrf.mxu0
      %v568 = vadd.f32 0.0, %v567
      %569 = vdwg.mxu0
      %s570 = scalar_lea.vmem %s2, 16
      %v571 = vld [vmem:[%s570] sm:$0xff]
      %v572 = vld [vmem:[%s570 + $0x8] sm:$0xff]
      %vm573 = vcmask 130048
      %v575 = vsel %vm573, %v571, 0
      %v578 = vsel %vm573, %v572, 0
      %580 = vmatpush.msra.mxu0 0.0
      %581 = vmatpush.msra.mxu0 0.0
      %582 = vmatpush.msra.mxu0 0.0
      %583 = vmatpush.msra.mxu0 0.0
      %584 = vmatpush.msra.mxu0 0.0
      %585 = vmatpush.msra.mxu0 0.0
      %586 = vmatpush.msra.mxu0 0.0
      %587 = vmatpush.msra.mxu0 0.0
      %588 = vmatpush.msra.mxu0 0.0
      %589 = vmatpush.msra.mxu0 0.0
      %590 = vmatpush.msra.mxu0 0.0
      %591 = vmatpush.msra.mxu0 0.0
      %592 = vmatpush.msra.mxu0 0.0
      %593 = vmatpush.msra.mxu0 0.0
      %594 = vmatpush.msra.mxu0 %v478
      %595 = vmatpush.msra.mxu0 %v475
      %596 = vmatmul.f32.gmra.mxu0 %v575
      %v597 = vpop.f32.mrf.mxu0
      %v598 = vadd.f32 0.0, %v597
      %599 = vmatmul.f32.gmra.mxu0 %v578
      %v600 = vpop.f32.mrf.mxu0
      %v601 = vadd.f32 0.0, %v600
      %602 = vdwg.mxu0
      %603 = vmatpush.msra.mxu0 0.0
      %604 = vmatpush.msra.mxu0 0.0
      %605 = vmatpush.msra.mxu0 0.0
      %606 = vmatpush.msra.mxu0 0.0
      %607 = vmatpush.msra.mxu0 0.0
      %608 = vmatpush.msra.mxu0 0.0
      %609 = vmatpush.msra.mxu0 0.0
      %610 = vmatpush.msra.mxu0 0.0
      %611 = vmatpush.msra.mxu0 0.0
      %612 = vmatpush.msra.mxu0 0.0
      %613 = vmatpush.msra.mxu0 0.0
      %614 = vmatpush.msra.mxu0 0.0
      %615 = vmatpush.msra.mxu0 0.0
      %616 = vmatpush.msra.mxu0 0.0
      %617 = vmatpush.msra.mxu0 %v484
      %618 = vmatpush.msra.mxu0 %v481
      %619 = vmatmul.f32.gmra.mxu0 %v575
      %v620 = vpop.f32.mrf.mxu0
      %v621 = vadd.f32 0.0, %v620
      %622 = vmatmul.f32.gmra.mxu0 %v578
      %v623 = vpop.f32.mrf.mxu0
      %v624 = vadd.f32 0.0, %v623
      %625 = vdwg.mxu0
      %626 = vmatpush.msra.mxu0 0.0
      %627 = vmatpush.msra.mxu0 0.0
      %628 = vmatpush.msra.mxu0 0.0
      %629 = vmatpush.msra.mxu0 0.0
      %630 = vmatpush.msra.mxu0 0.0
      %631 = vmatpush.msra.mxu0 0.0
      %632 = vmatpush.msra.mxu0 0.0
      %633 = vmatpush.msra.mxu0 0.0
      %634 = vmatpush.msra.mxu0 0.0
      %635 = vmatpush.msra.mxu0 0.0
      %636 = vmatpush.msra.mxu0 0.0
      %637 = vmatpush.msra.mxu0 0.0
      %638 = vmatpush.msra.mxu0 0.0
      %639 = vmatpush.msra.mxu0 0.0
      %640 = vmatpush.msra.mxu0 %v490
      %641 = vmatpush.msra.mxu0 %v487
      %642 = vmatmul.f32.gmra.mxu0 %v575
      %v643 = vpop.f32.mrf.mxu0
      %v644 = vadd.f32 0.0, %v643
      %645 = vmatmul.f32.gmra.mxu0 %v578
      %v646 = vpop.f32.mrf.mxu0
      %v647 = vadd.f32 0.0, %v646
      %648 = vdwg.mxu0
      %649 = vmatpush.msra.mxu0 0.0
      %650 = vmatpush.msra.mxu0 0.0
      %651 = vmatpush.msra.mxu0 0.0
      %652 = vmatpush.msra.mxu0 0.0
      %653 = vmatpush.msra.mxu0 0.0
      %654 = vmatpush.msra.mxu0 0.0
      %655 = vmatpush.msra.mxu0 0.0
      %656 = vmatpush.msra.mxu0 0.0
      %657 = vmatpush.msra.mxu0 0.0
      %658 = vmatpush.msra.mxu0 0.0
      %659 = vmatpush.msra.mxu0 0.0
      %660 = vmatpush.msra.mxu0 0.0
      %661 = vmatpush.msra.mxu0 0.0
      %662 = vmatpush.msra.mxu0 0.0
      %663 = vmatpush.msra.mxu0 %v496
      %664 = vmatpush.msra.mxu0 %v493
      %665 = vmatmul.f32.gmra.mxu0 %v575
      %v666 = vpop.f32.mrf.mxu0
      %v667 = vadd.f32 0.0, %v666
      %668 = vmatmul.f32.gmra.mxu0 %v578
      %v669 = vpop.f32.mrf.mxu0
      %v670 = vadd.f32 0.0, %v669
      %671 = vdwg.mxu0
      %672 = vmatpush.msra.mxu0 0.0
      %673 = vmatpush.msra.mxu0 0.0
      %674 = vmatpush.msra.mxu0 0.0
      %675 = vmatpush.msra.mxu0 0.0
      %676 = vmatpush.msra.mxu0 0.0
      %677 = vmatpush.msra.mxu0 0.0
      %678 = vmatpush.msra.mxu0 0.0
      %679 = vmatpush.msra.mxu0 0.0
      %680 = vmatpush.msra.mxu0 0.0
      %681 = vmatpush.msra.mxu0 0.0
      %682 = vmatpush.msra.mxu0 0.0
      %683 = vmatpush.msra.mxu0 0.0
      %684 = vmatpush.msra.mxu0 0.0
      %685 = vmatpush.msra.mxu0 0.0
      %686 = vmatpush.msra.mxu0 %v502
      %687 = vmatpush.msra.mxu0 %v499
      %688 = vmatmul.f32.gmra.mxu0 %v575
      %v689 = vpop.f32.mrf.mxu0
      %v690 = vadd.f32 0.0, %v689
      %691 = vmatmul.f32.gmra.mxu0 %v578
      %v692 = vpop.f32.mrf.mxu0
      %v693 = vadd.f32 0.0, %v692
      %694 = vdwg.mxu0
      %695 = vmatpush.msra.mxu0 0.0
      %696 = vmatpush.msra.mxu0 0.0
      %697 = vmatpush.msra.mxu0 0.0
      %698 = vmatpush.msra.mxu0 0.0
      %699 = vmatpush.msra.mxu0 0.0
      %700 = vmatpush.msra.mxu0 0.0
      %701 = vmatpush.msra.mxu0 0.0
      %702 = vmatpush.msra.mxu0 0.0
      %703 = vmatpush.msra.mxu0 0.0
      %704 = vmatpush.msra.mxu0 0.0
      %705 = vmatpush.msra.mxu0 0.0
      %706 = vmatpush.msra.mxu0 0.0
      %707 = vmatpush.msra.mxu0 0.0
      %708 = vmatpush.msra.mxu0 0.0
      %709 = vmatpush.msra.mxu0 %v508
      %710 = vmatpush.msra.mxu0 %v505
      %711 = vmatmul.f32.gmra.mxu0 %v575
      %v712 = vpop.f32.mrf.mxu0
      %v713 = vadd.f32 0.0, %v712
      %714 = vmatmul.f32.gmra.mxu0 %v578
      %v715 = vpop.f32.mrf.mxu0
      %v716 = vadd.f32 0.0, %v715
      %717 = vdwg.mxu0
      %718 = vmatpush.msra.mxu0 0.0
      %719 = vmatpush.msra.mxu0 0.0
      %720 = vmatpush.msra.mxu0 0.0
      %721 = vmatpush.msra.mxu0 0.0
      %722 = vmatpush.msra.mxu0 0.0
      %723 = vmatpush.msra.mxu0 0.0
      %724 = vmatpush.msra.mxu0 0.0
      %725 = vmatpush.msra.mxu0 0.0
      %726 = vmatpush.msra.mxu0 0.0
      %727 = vmatpush.msra.mxu0 0.0
      %728 = vmatpush.msra.mxu0 0.0
      %729 = vmatpush.msra.mxu0 0.0
      %730 = vmatpush.msra.mxu0 0.0
      %731 = vmatpush.msra.mxu0 0.0
      %732 = vmatpush.msra.mxu0 %v514
      %733 = vmatpush.msra.mxu0 %v511
      %734 = vmatmul.f32.gmra.mxu0 %v575
      %v735 = vpop.f32.mrf.mxu0
      %v736 = vadd.f32 0.0, %v735
      %737 = vmatmul.f32.gmra.mxu0 %v578
      %v738 = vpop.f32.mrf.mxu0
      %v739 = vadd.f32 0.0, %v738
      %740 = vdwg.mxu0
      %741 = vmatpush.msra.mxu0 0.0
      %742 = vmatpush.msra.mxu0 0.0
      %743 = vmatpush.msra.mxu0 0.0
      %744 = vmatpush.msra.mxu0 0.0
      %745 = vmatpush.msra.mxu0 0.0
      %746 = vmatpush.msra.mxu0 0.0
      %747 = vmatpush.msra.mxu0 0.0
      %748 = vmatpush.msra.mxu0 0.0
      %749 = vmatpush.msra.mxu0 0.0
      %750 = vmatpush.msra.mxu0 0.0
      %751 = vmatpush.msra.mxu0 0.0
      %752 = vmatpush.msra.mxu0 0.0
      %753 = vmatpush.msra.mxu0 0.0
      %754 = vmatpush.msra.mxu0 0.0
      %755 = vmatpush.msra.mxu0 %v520
      %756 = vmatpush.msra.mxu0 %v517
      %757 = vmatmul.f32.gmra.mxu0 %v575
      %v758 = vpop.f32.mrf.mxu0
      %v759 = vadd.f32 0.0, %v758
      %760 = vmatmul.f32.gmra.mxu0 %v578
      %v761 = vpop.f32.mrf.mxu0
      %v762 = vadd.f32 0.0, %v761
      %763 = vdwg.mxu0
      %764 = vmatpush.msra.mxu0 0.0
      %765 = vmatpush.msra.mxu0 0.0
      %766 = vmatpush.msra.mxu0 0.0
      %767 = vmatpush.msra.mxu0 0.0
      %768 = vmatpush.msra.mxu0 0.0
      %769 = vmatpush.msra.mxu0 0.0
      %770 = vmatpush.msra.mxu0 0.0
      %771 = vmatpush.msra.mxu0 0.0
      %772 = vmatpush.msra.mxu0 0.0
      %773 = vmatpush.msra.mxu0 0.0
      %774 = vmatpush.msra.mxu0 0.0
      %775 = vmatpush.msra.mxu0 0.0
      %776 = vmatpush.msra.mxu0 0.0
      %777 = vmatpush.msra.mxu0 0.0
      %778 = vmatpush.msra.mxu0 %v526
      %779 = vmatpush.msra.mxu0 %v523
      %780 = vmatmul.f32.gmra.mxu0 %v575
      %v781 = vpop.f32.mrf.mxu0
      %v782 = vadd.f32 0.0, %v781
      %783 = vmatmul.f32.gmra.mxu0 %v578
      %v784 = vpop.f32.mrf.mxu0
      %v785 = vadd.f32 0.0, %v784
      %786 = vdwg.mxu0
      %787 = vmatpush.msra.mxu0 0.0
      %788 = vmatpush.msra.mxu0 0.0
      %789 = vmatpush.msra.mxu0 0.0
      %790 = vmatpush.msra.mxu0 0.0
      %791 = vmatpush.msra.mxu0 0.0
      %792 = vmatpush.msra.mxu0 0.0
      %793 = vmatpush.msra.mxu0 0.0
      %794 = vmatpush.msra.mxu0 0.0
      %795 = vmatpush.msra.mxu0 0.0
      %796 = vmatpush.msra.mxu0 0.0
      %797 = vmatpush.msra.mxu0 0.0
      %798 = vmatpush.msra.mxu0 0.0
      %799 = vmatpush.msra.mxu0 0.0
      %800 = vmatpush.msra.mxu0 0.0
      %801 = vmatpush.msra.mxu0 %v532
      %802 = vmatpush.msra.mxu0 %v529
      %803 = vmatmul.f32.gmra.mxu0 %v575
      %v804 = vpop.f32.mrf.mxu0
      %v805 = vadd.f32 0.0, %v804
      %806 = vmatmul.f32.gmra.mxu0 %v578
      %v807 = vpop.f32.mrf.mxu0
      %v808 = vadd.f32 0.0, %v807
      %809 = vdwg.mxu0
      %810 = vmatpush.msra.mxu0 0.0
      %811 = vmatpush.msra.mxu0 0.0
      %812 = vmatpush.msra.mxu0 0.0
      %813 = vmatpush.msra.mxu0 0.0
      %814 = vmatpush.msra.mxu0 0.0
      %815 = vmatpush.msra.mxu0 0.0
      %816 = vmatpush.msra.mxu0 0.0
      %817 = vmatpush.msra.mxu0 0.0
      %818 = vmatpush.msra.mxu0 0.0
      %819 = vmatpush.msra.mxu0 0.0
      %820 = vmatpush.msra.mxu0 0.0
      %821 = vmatpush.msra.mxu0 0.0
      %822 = vmatpush.msra.mxu0 0.0
      %823 = vmatpush.msra.mxu0 0.0
      %824 = vmatpush.msra.mxu0 %v538
      %825 = vmatpush.msra.mxu0 %v535
      %826 = vmatmul.f32.gmra.mxu0 %v575
      %v827 = vpop.f32.mrf.mxu0
      %v828 = vadd.f32 0.0, %v827
      %829 = vmatmul.f32.gmra.mxu0 %v578
      %v830 = vpop.f32.mrf.mxu0
      %v831 = vadd.f32 0.0, %v830
      %832 = vdwg.mxu0
      %833 = vmatpush.msra.mxu0 0.0
      %834 = vmatpush.msra.mxu0 0.0
      %835 = vmatpush.msra.mxu0 0.0
      %836 = vmatpush.msra.mxu0 0.0
      %837 = vmatpush.msra.mxu0 0.0
      %838 = vmatpush.msra.mxu0 0.0
      %839 = vmatpush.msra.mxu0 0.0
      %840 = vmatpush.msra.mxu0 0.0
      %841 = vmatpush.msra.mxu0 0.0
      %842 = vmatpush.msra.mxu0 0.0
      %843 = vmatpush.msra.mxu0 0.0
      %844 = vmatpush.msra.mxu0 0.0
      %845 = vmatpush.msra.mxu0 0.0
      %846 = vmatpush.msra.mxu0 0.0
      %847 = vmatpush.msra.mxu0 %v544
      %848 = vmatpush.msra.mxu0 %v541
      %849 = vmatmul.f32.gmra.mxu0 %v575
      %v850 = vpop.f32.mrf.mxu0
      %v851 = vadd.f32 0.0, %v850
      %852 = vmatmul.f32.gmra.mxu0 %v578
      %v853 = vpop.f32.mrf.mxu0
      %v854 = vadd.f32 0.0, %v853
      %855 = vdwg.mxu0
      %856 = vmatpush.msra.mxu0 0.0
      %857 = vmatpush.msra.mxu0 0.0
      %858 = vmatpush.msra.mxu0 0.0
      %859 = vmatpush.msra.mxu0 0.0
      %860 = vmatpush.msra.mxu0 0.0
      %861 = vmatpush.msra.mxu0 0.0
      %862 = vmatpush.msra.mxu0 0.0
      %863 = vmatpush.msra.mxu0 0.0
      %864 = vmatpush.msra.mxu0 0.0
      %865 = vmatpush.msra.mxu0 0.0
      %866 = vmatpush.msra.mxu0 0.0
      %867 = vmatpush.msra.mxu0 0.0
      %868 = vmatpush.msra.mxu0 0.0
      %869 = vmatpush.msra.mxu0 0.0
      %870 = vmatpush.msra.mxu0 %v550
      %871 = vmatpush.msra.mxu0 %v547
      %872 = vmatmul.f32.gmra.mxu0 %v575
      %v873 = vpop.f32.mrf.mxu0
      %v874 = vadd.f32 0.0, %v873
      %875 = vmatmul.f32.gmra.mxu0 %v578
      %v876 = vpop.f32.mrf.mxu0
      %v877 = vadd.f32 0.0, %v876
      %878 = vdwg.mxu0
      %879 = vmatpush.msra.mxu0 0.0
      %880 = vmatpush.msra.mxu0 0.0
      %881 = vmatpush.msra.mxu0 0.0
      %882 = vmatpush.msra.mxu0 0.0
      %883 = vmatpush.msra.mxu0 0.0
      %884 = vmatpush.msra.mxu0 0.0
      %885 = vmatpush.msra.mxu0 0.0
      %886 = vmatpush.msra.mxu0 0.0
      %887 = vmatpush.msra.mxu0 0.0
      %888 = vmatpush.msra.mxu0 0.0
      %889 = vmatpush.msra.mxu0 0.0
      %890 = vmatpush.msra.mxu0 0.0
      %891 = vmatpush.msra.mxu0 0.0
      %892 = vmatpush.msra.mxu0 0.0
      %893 = vmatpush.msra.mxu0 %v556
      %894 = vmatpush.msra.mxu0 %v553
      %895 = vmatmul.f32.gmra.mxu0 %v575
      %v896 = vpop.f32.mrf.mxu0
      %v897 = vadd.f32 0.0, %v896
      %898 = vmatmul.f32.gmra.mxu0 %v578
      %v899 = vpop.f32.mrf.mxu0
      %v900 = vadd.f32 0.0, %v899
      %901 = vdwg.mxu0
      %902 = vmatpush.msra.mxu0 0.0
      %903 = vmatpush.msra.mxu0 0.0
      %904 = vmatpush.msra.mxu0 0.0
      %905 = vmatpush.msra.mxu0 0.0
      %906 = vmatpush.msra.mxu0 0.0
      %907 = vmatpush.msra.mxu0 0.0
      %908 = vmatpush.msra.mxu0 0.0
      %909 = vmatpush.msra.mxu0 0.0
      %910 = vmatpush.msra.mxu0 0.0
      %911 = vmatpush.msra.mxu0 0.0
      %912 = vmatpush.msra.mxu0 0.0
      %913 = vmatpush.msra.mxu0 0.0
      %914 = vmatpush.msra.mxu0 0.0
      %915 = vmatpush.msra.mxu0 0.0
      %916 = vmatpush.msra.mxu0 %v562
      %917 = vmatpush.msra.mxu0 %v559
      %918 = vmatmul.f32.gmra.mxu0 %v575
      %v919 = vpop.f32.mrf.mxu0
      %v920 = vadd.f32 0.0, %v919
      %921 = vmatmul.f32.gmra.mxu0 %v578
      %v922 = vpop.f32.mrf.mxu0
      %v923 = vadd.f32 0.0, %v922
      %924 = vdwg.mxu0
      %925 = vmatpush.msra.mxu0 0.0
      %926 = vmatpush.msra.mxu0 0.0
      %927 = vmatpush.msra.mxu0 0.0
      %928 = vmatpush.msra.mxu0 0.0
      %929 = vmatpush.msra.mxu0 0.0
      %930 = vmatpush.msra.mxu0 0.0
      %931 = vmatpush.msra.mxu0 0.0
      %932 = vmatpush.msra.mxu0 0.0
      %933 = vmatpush.msra.mxu0 0.0
      %934 = vmatpush.msra.mxu0 0.0
      %935 = vmatpush.msra.mxu0 0.0
      %936 = vmatpush.msra.mxu0 0.0
      %937 = vmatpush.msra.mxu0 0.0
      %938 = vmatpush.msra.mxu0 0.0
      %939 = vmatpush.msra.mxu0 %v568
      %940 = vmatpush.msra.mxu0 %v565
      %941 = vmatmul.f32.gmra.mxu0 %v575
      %v942 = vpop.f32.mrf.mxu0
      %v943 = vadd.f32 0.0, %v942
      %944 = vmatmul.f32.gmra.mxu0 %v578
      %v945 = vpop.f32.mrf.mxu0
      %v946 = vadd.f32 0.0, %v945
      %947 = vdwg.mxu0
      %v949 = vsel %vm573, %v450, 0
      %v952 = vsel %vm573, %v451, 0
      %954 = vmatpush.msra.mxu0 0.0
      %955 = vmatpush.msra.mxu0 0.0
      %956 = vmatpush.msra.mxu0 0.0
      %957 = vmatpush.msra.mxu0 0.0
      %958 = vmatpush.msra.mxu0 0.0
      %959 = vmatpush.msra.mxu0 0.0
      %960 = vmatpush.msra.mxu0 0.0
      %961 = vmatpush.msra.mxu0 0.0
      %962 = vmatpush.msra.mxu0 0.0
      %963 = vmatpush.msra.mxu0 0.0
      %964 = vmatpush.msra.mxu0 0.0
      %965 = vmatpush.msra.mxu0 0.0
      %966 = vmatpush.msra.mxu0 0.0
      %967 = vmatpush.msra.mxu0 0.0
      %968 = vmatpush.msra.mxu0 %v358
      %969 = vmatpush.msra.mxu0 %v355
      %970 = vmatmul.f32.gmra.mxu0 %v949
      %v971 = vpop.f32.mrf.mxu0
      %v972 = vadd.f32 %v598, %v971
      %973 = vmatmul.f32.gmra.mxu0 %v952
      %v974 = vpop.f32.mrf.mxu0
      %v975 = vadd.f32 %v601, %v974
      %976 = vdwg.mxu0
      %977 = vmatpush.msra.mxu0 0.0
      %978 = vmatpush.msra.mxu0 0.0
      %979 = vmatpush.msra.mxu0 0.0
      %980 = vmatpush.msra.mxu0 0.0
      %981 = vmatpush.msra.mxu0 0.0
      %982 = vmatpush.msra.mxu0 0.0
      %983 = vmatpush.msra.mxu0 0.0
      %984 = vmatpush.msra.mxu0 0.0
      %985 = vmatpush.msra.mxu0 0.0
      %986 = vmatpush.msra.mxu0 0.0
      %987 = vmatpush.msra.mxu0 0.0
      %988 = vmatpush.msra.mxu0 0.0
      %989 = vmatpush.msra.mxu0 0.0
      %990 = vmatpush.msra.mxu0 0.0
      %991 = vmatpush.msra.mxu0 %v364
      %992 = vmatpush.msra.mxu0 %v361
      %993 = vmatmul.f32.gmra.mxu0 %v949
      %v994 = vpop.f32.mrf.mxu0
      %v995 = vadd.f32 %v621, %v994
      %996 = vmatmul.f32.gmra.mxu0 %v952
      %v997 = vpop.f32.mrf.mxu0
      %v998 = vadd.f32 %v624, %v997
      %999 = vdwg.mxu0
      %1000 = vmatpush.msra.mxu0 0.0
      %1001 = vmatpush.msra.mxu0 0.0
      %1002 = vmatpush.msra.mxu0 0.0
      %1003 = vmatpush.msra.mxu0 0.0
      %1004 = vmatpush.msra.mxu0 0.0
      %1005 = vmatpush.msra.mxu0 0.0
      %1006 = vmatpush.msra.mxu0 0.0
      %1007 = vmatpush.msra.mxu0 0.0
      %1008 = vmatpush.msra.mxu0 0.0
      %1009 = vmatpush.msra.mxu0 0.0
      %1010 = vmatpush.msra.mxu0 0.0
      %1011 = vmatpush.msra.mxu0 0.0
      %1012 = vmatpush.msra.mxu0 0.0
      %1013 = vmatpush.msra.mxu0 0.0
      %1014 = vmatpush.msra.mxu0 %v370
      %1015 = vmatpush.msra.mxu0 %v367
      %1016 = vmatmul.f32.gmra.mxu0 %v949
      %v1017 = vpop.f32.mrf.mxu0
      %v1018 = vadd.f32 %v644, %v1017
      %1019 = vmatmul.f32.gmra.mxu0 %v952
      %v1020 = vpop.f32.mrf.mxu0
      %v1021 = vadd.f32 %v647, %v1020
      %1022 = vdwg.mxu0
      %1023 = vmatpush.msra.mxu0 0.0
      %1024 = vmatpush.msra.mxu0 0.0
      %1025 = vmatpush.msra.mxu0 0.0
      %1026 = vmatpush.msra.mxu0 0.0
      %1027 = vmatpush.msra.mxu0 0.0
      %1028 = vmatpush.msra.mxu0 0.0
      %1029 = vmatpush.msra.mxu0 0.0
      %1030 = vmatpush.msra.mxu0 0.0
      %1031 = vmatpush.msra.mxu0 0.0
      %1032 = vmatpush.msra.mxu0 0.0
      %1033 = vmatpush.msra.mxu0 0.0
      %1034 = vmatpush.msra.mxu0 0.0
      %1035 = vmatpush.msra.mxu0 0.0
      %1036 = vmatpush.msra.mxu0 0.0
      %1037 = vmatpush.msra.mxu0 %v376
      %1038 = vmatpush.msra.mxu0 %v373
      %1039 = vmatmul.f32.gmra.mxu0 %v949
      %v1040 = vpop.f32.mrf.mxu0
      %v1041 = vadd.f32 %v667, %v1040
      %1042 = vmatmul.f32.gmra.mxu0 %v952
      %v1043 = vpop.f32.mrf.mxu0
      %v1044 = vadd.f32 %v670, %v1043
      %1045 = vdwg.mxu0
      %1046 = vmatpush.msra.mxu0 0.0
      %1047 = vmatpush.msra.mxu0 0.0
      %1048 = vmatpush.msra.mxu0 0.0
      %1049 = vmatpush.msra.mxu0 0.0
      %1050 = vmatpush.msra.mxu0 0.0
      %1051 = vmatpush.msra.mxu0 0.0
      %1052 = vmatpush.msra.mxu0 0.0
      %1053 = vmatpush.msra.mxu0 0.0
      %1054 = vmatpush.msra.mxu0 0.0
      %1055 = vmatpush.msra.mxu0 0.0
      %1056 = vmatpush.msra.mxu0 0.0
      %1057 = vmatpush.msra.mxu0 0.0
      %1058 = vmatpush.msra.mxu0 0.0
      %1059 = vmatpush.msra.mxu0 0.0
      %1060 = vmatpush.msra.mxu0 %v382
      %1061 = vmatpush.msra.mxu0 %v379
      %1062 = vmatmul.f32.gmra.mxu0 %v949
      %v1063 = vpop.f32.mrf.mxu0
      %v1064 = vadd.f32 %v690, %v1063
      %1065 = vmatmul.f32.gmra.mxu0 %v952
      %v1066 = vpop.f32.mrf.mxu0
      %v1067 = vadd.f32 %v693, %v1066
      %1068 = vdwg.mxu0
      %1069 = vmatpush.msra.mxu0 0.0
      %1070 = vmatpush.msra.mxu0 0.0
      %1071 = vmatpush.msra.mxu0 0.0
      %1072 = vmatpush.msra.mxu0 0.0
      %1073 = vmatpush.msra.mxu0 0.0
      %1074 = vmatpush.msra.mxu0 0.0
      %1075 = vmatpush.msra.mxu0 0.0
      %1076 = vmatpush.msra.mxu0 0.0
      %1077 = vmatpush.msra.mxu0 0.0
      %1078 = vmatpush.msra.mxu0 0.0
      %1079 = vmatpush.msra.mxu0 0.0
      %1080 = vmatpush.msra.mxu0 0.0
      %1081 = vmatpush.msra.mxu0 0.0
      %1082 = vmatpush.msra.mxu0 0.0
      %1083 = vmatpush.msra.mxu0 %v388
      %1084 = vmatpush.msra.mxu0 %v385
      %1085 = vmatmul.f32.gmra.mxu0 %v949
      %v1086 = vpop.f32.mrf.mxu0
      %v1087 = vadd.f32 %v713, %v1086
      %1088 = vmatmul.f32.gmra.mxu0 %v952
      %v1089 = vpop.f32.mrf.mxu0
      %v1090 = vadd.f32 %v716, %v1089
      %1091 = vdwg.mxu0
      %1092 = vmatpush.msra.mxu0 0.0
      %1093 = vmatpush.msra.mxu0 0.0
      %1094 = vmatpush.msra.mxu0 0.0
      %1095 = vmatpush.msra.mxu0 0.0
      %1096 = vmatpush.msra.mxu0 0.0
      %1097 = vmatpush.msra.mxu0 0.0
      %1098 = vmatpush.msra.mxu0 0.0
      %1099 = vmatpush.msra.mxu0 0.0
      %1100 = vmatpush.msra.mxu0 0.0
      %1101 = vmatpush.msra.mxu0 0.0
      %1102 = vmatpush.msra.mxu0 0.0
      %1103 = vmatpush.msra.mxu0 0.0
      %1104 = vmatpush.msra.mxu0 0.0
      %1105 = vmatpush.msra.mxu0 0.0
      %1106 = vmatpush.msra.mxu0 %v394
      %1107 = vmatpush.msra.mxu0 %v391
      %1108 = vmatmul.f32.gmra.mxu0 %v949
      %v1109 = vpop.f32.mrf.mxu0
      %v1110 = vadd.f32 %v736, %v1109
      %1111 = vmatmul.f32.gmra.mxu0 %v952
      %v1112 = vpop.f32.mrf.mxu0
      %v1113 = vadd.f32 %v739, %v1112
      %1114 = vdwg.mxu0
      %1115 = vmatpush.msra.mxu0 0.0
      %1116 = vmatpush.msra.mxu0 0.0
      %1117 = vmatpush.msra.mxu0 0.0
      %1118 = vmatpush.msra.mxu0 0.0
      %1119 = vmatpush.msra.mxu0 0.0
      %1120 = vmatpush.msra.mxu0 0.0
      %1121 = vmatpush.msra.mxu0 0.0
      %1122 = vmatpush.msra.mxu0 0.0
      %1123 = vmatpush.msra.mxu0 0.0
      %1124 = vmatpush.msra.mxu0 0.0
      %1125 = vmatpush.msra.mxu0 0.0
      %1126 = vmatpush.msra.mxu0 0.0
      %1127 = vmatpush.msra.mxu0 0.0
      %1128 = vmatpush.msra.mxu0 0.0
      %1129 = vmatpush.msra.mxu0 %v400
      %1130 = vmatpush.msra.mxu0 %v397
      %1131 = vmatmul.f32.gmra.mxu0 %v949
      %v1132 = vpop.f32.mrf.mxu0
      %v1133 = vadd.f32 %v759, %v1132
      %1134 = vmatmul.f32.gmra.mxu0 %v952
      %v1135 = vpop.f32.mrf.mxu0
      %v1136 = vadd.f32 %v762, %v1135
      %1137 = vdwg.mxu0
      %1138 = vmatpush.msra.mxu0 0.0
      %1139 = vmatpush.msra.mxu0 0.0
      %1140 = vmatpush.msra.mxu0 0.0
      %1141 = vmatpush.msra.mxu0 0.0
      %1142 = vmatpush.msra.mxu0 0.0
      %1143 = vmatpush.msra.mxu0 0.0
      %1144 = vmatpush.msra.mxu0 0.0
      %1145 = vmatpush.msra.mxu0 0.0
      %1146 = vmatpush.msra.mxu0 0.0
      %1147 = vmatpush.msra.mxu0 0.0
      %1148 = vmatpush.msra.mxu0 0.0
      %1149 = vmatpush.msra.mxu0 0.0
      %1150 = vmatpush.msra.mxu0 0.0
      %1151 = vmatpush.msra.mxu0 0.0
      %1152 = vmatpush.msra.mxu0 %v406
      %1153 = vmatpush.msra.mxu0 %v403
      %1154 = vmatmul.f32.gmra.mxu0 %v949
      %v1155 = vpop.f32.mrf.mxu0
      %v1156 = vadd.f32 %v782, %v1155
      %1157 = vmatmul.f32.gmra.mxu0 %v952
      %v1158 = vpop.f32.mrf.mxu0
      %v1159 = vadd.f32 %v785, %v1158
      %1160 = vdwg.mxu0
      %1161 = vmatpush.msra.mxu0 0.0
      %1162 = vmatpush.msra.mxu0 0.0
      %1163 = vmatpush.msra.mxu0 0.0
      %1164 = vmatpush.msra.mxu0 0.0
      %1165 = vmatpush.msra.mxu0 0.0
      %1166 = vmatpush.msra.mxu0 0.0
      %1167 = vmatpush.msra.mxu0 0.0
      %1168 = vmatpush.msra.mxu0 0.0
      %1169 = vmatpush.msra.mxu0 0.0
      %1170 = vmatpush.msra.mxu0 0.0
      %1171 = vmatpush.msra.mxu0 0.0
      %1172 = vmatpush.msra.mxu0 0.0
      %1173 = vmatpush.msra.mxu0 0.0
      %1174 = vmatpush.msra.mxu0 0.0
      %1175 = vmatpush.msra.mxu0 %v412
      %1176 = vmatpush.msra.mxu0 %v409
      %1177 = vmatmul.f32.gmra.mxu0 %v949
      %v1178 = vpop.f32.mrf.mxu0
      %v1179 = vadd.f32 %v805, %v1178
      %1180 = vmatmul.f32.gmra.mxu0 %v952
      %v1181 = vpop.f32.mrf.mxu0
      %v1182 = vadd.f32 %v808, %v1181
      %1183 = vdwg.mxu0
      %1184 = vmatpush.msra.mxu0 0.0
      %1185 = vmatpush.msra.mxu0 0.0
      %1186 = vmatpush.msra.mxu0 0.0
      %1187 = vmatpush.msra.mxu0 0.0
      %1188 = vmatpush.msra.mxu0 0.0
      %1189 = vmatpush.msra.mxu0 0.0
      %1190 = vmatpush.msra.mxu0 0.0
      %1191 = vmatpush.msra.mxu0 0.0
      %1192 = vmatpush.msra.mxu0 0.0
      %1193 = vmatpush.msra.mxu0 0.0
      %1194 = vmatpush.msra.mxu0 0.0
      %1195 = vmatpush.msra.mxu0 0.0
      %1196 = vmatpush.msra.mxu0 0.0
      %1197 = vmatpush.msra.mxu0 0.0
      %1198 = vmatpush.msra.mxu0 %v418
      %1199 = vmatpush.msra.mxu0 %v415
      %1200 = vmatmul.f32.gmra.mxu0 %v949
      %v1201 = vpop.f32.mrf.mxu0
      %v1202 = vadd.f32 %v828, %v1201
      %1203 = vmatmul.f32.gmra.mxu0 %v952
      %v1204 = vpop.f32.mrf.mxu0
      %v1205 = vadd.f32 %v831, %v1204
      %1206 = vdwg.mxu0
      %1207 = vmatpush.msra.mxu0 0.0
      %1208 = vmatpush.msra.mxu0 0.0
      %1209 = vmatpush.msra.mxu0 0.0
      %1210 = vmatpush.msra.mxu0 0.0
      %1211 = vmatpush.msra.mxu0 0.0
      %1212 = vmatpush.msra.mxu0 0.0
      %1213 = vmatpush.msra.mxu0 0.0
      %1214 = vmatpush.msra.mxu0 0.0
      %1215 = vmatpush.msra.mxu0 0.0
      %1216 = vmatpush.msra.mxu0 0.0
      %1217 = vmatpush.msra.mxu0 0.0
      %1218 = vmatpush.msra.mxu0 0.0
      %1219 = vmatpush.msra.mxu0 0.0
      %1220 = vmatpush.msra.mxu0 0.0
      %1221 = vmatpush.msra.mxu0 %v424
      %1222 = vmatpush.msra.mxu0 %v421
      %1223 = vmatmul.f32.gmra.mxu0 %v949
      %v1224 = vpop.f32.mrf.mxu0
      %v1225 = vadd.f32 %v851, %v1224
      %1226 = vmatmul.f32.gmra.mxu0 %v952
      %v1227 = vpop.f32.mrf.mxu0
      %v1228 = vadd.f32 %v854, %v1227
      %1229 = vdwg.mxu0
      %1230 = vmatpush.msra.mxu0 0.0
      %1231 = vmatpush.msra.mxu0 0.0
      %1232 = vmatpush.msra.mxu0 0.0
      %1233 = vmatpush.msra.mxu0 0.0
      %1234 = vmatpush.msra.mxu0 0.0
      %1235 = vmatpush.msra.mxu0 0.0
      %1236 = vmatpush.msra.mxu0 0.0
      %1237 = vmatpush.msra.mxu0 0.0
      %1238 = vmatpush.msra.mxu0 0.0
      %1239 = vmatpush.msra.mxu0 0.0
      %1240 = vmatpush.msra.mxu0 0.0
      %1241 = vmatpush.msra.mxu0 0.0
      %1242 = vmatpush.msra.mxu0 0.0
      %1243 = vmatpush.msra.mxu0 0.0
      %1244 = vmatpush.msra.mxu0 %v430
      %1245 = vmatpush.msra.mxu0 %v427
      %1246 = vmatmul.f32.gmra.mxu0 %v949
      %v1247 = vpop.f32.mrf.mxu0
      %v1248 = vadd.f32 %v874, %v1247
      %1249 = vmatmul.f32.gmra.mxu0 %v952
      %v1250 = vpop.f32.mrf.mxu0
      %v1251 = vadd.f32 %v877, %v1250
      %1252 = vdwg.mxu0
      %1253 = vmatpush.msra.mxu0 0.0
      %1254 = vmatpush.msra.mxu0 0.0
      %1255 = vmatpush.msra.mxu0 0.0
      %1256 = vmatpush.msra.mxu0 0.0
      %1257 = vmatpush.msra.mxu0 0.0
      %1258 = vmatpush.msra.mxu0 0.0
      %1259 = vmatpush.msra.mxu0 0.0
      %1260 = vmatpush.msra.mxu0 0.0
      %1261 = vmatpush.msra.mxu0 0.0
      %1262 = vmatpush.msra.mxu0 0.0
      %1263 = vmatpush.msra.mxu0 0.0
      %1264 = vmatpush.msra.mxu0 0.0
      %1265 = vmatpush.msra.mxu0 0.0
      %1266 = vmatpush.msra.mxu0 0.0
      %1267 = vmatpush.msra.mxu0 %v436
      %1268 = vmatpush.msra.mxu0 %v433
      %1269 = vmatmul.f32.gmra.mxu0 %v949
      %v1270 = vpop.f32.mrf.mxu0
      %v1271 = vadd.f32 %v897, %v1270
      %1272 = vmatmul.f32.gmra.mxu0 %v952
      %v1273 = vpop.f32.mrf.mxu0
      %v1274 = vadd.f32 %v900, %v1273
      %1275 = vdwg.mxu0
      %1276 = vmatpush.msra.mxu0 0.0
      %1277 = vmatpush.msra.mxu0 0.0
      %1278 = vmatpush.msra.mxu0 0.0
      %1279 = vmatpush.msra.mxu0 0.0
      %1280 = vmatpush.msra.mxu0 0.0
      %1281 = vmatpush.msra.mxu0 0.0
      %1282 = vmatpush.msra.mxu0 0.0
      %1283 = vmatpush.msra.mxu0 0.0
      %1284 = vmatpush.msra.mxu0 0.0
      %1285 = vmatpush.msra.mxu0 0.0
      %1286 = vmatpush.msra.mxu0 0.0
      %1287 = vmatpush.msra.mxu0 0.0
      %1288 = vmatpush.msra.mxu0 0.0
      %1289 = vmatpush.msra.mxu0 0.0
      %1290 = vmatpush.msra.mxu0 %v442
      %1291 = vmatpush.msra.mxu0 %v439
      %1292 = vmatmul.f32.gmra.mxu0 %v949
      %v1293 = vpop.f32.mrf.mxu0
      %v1294 = vadd.f32 %v920, %v1293
      %1295 = vmatmul.f32.gmra.mxu0 %v952
      %v1296 = vpop.f32.mrf.mxu0
      %v1297 = vadd.f32 %v923, %v1296
      %1298 = vdwg.mxu0
      %1299 = vmatpush.msra.mxu0 0.0
      %1300 = vmatpush.msra.mxu0 0.0
      %1301 = vmatpush.msra.mxu0 0.0
      %1302 = vmatpush.msra.mxu0 0.0
      %1303 = vmatpush.msra.mxu0 0.0
      %1304 = vmatpush.msra.mxu0 0.0
      %1305 = vmatpush.msra.mxu0 0.0
      %1306 = vmatpush.msra.mxu0 0.0
      %1307 = vmatpush.msra.mxu0 0.0
      %1308 = vmatpush.msra.mxu0 0.0
      %1309 = vmatpush.msra.mxu0 0.0
      %1310 = vmatpush.msra.mxu0 0.0
      %1311 = vmatpush.msra.mxu0 0.0
      %1312 = vmatpush.msra.mxu0 0.0
      %1313 = vmatpush.msra.mxu0 %v448
      %1314 = vmatpush.msra.mxu0 %v445
      %1315 = vmatmul.f32.gmra.mxu0 %v949
      %v1316 = vpop.f32.mrf.mxu0
      %v1317 = vadd.f32 %v943, %v1316
      %1318 = vmatmul.f32.gmra.mxu0 %v952
      %v1319 = vpop.f32.mrf.mxu0
      %v1320 = vadd.f32 %v946, %v1319
      %1321 = vdwg.mxu0
      %s1322 = scalar_lea.vmem %s1, 8
      %v1323 = vld [vmem:[%s1322] sm:$0xf]
      %v1325 = vsel %vm333, %v1323, 0
      %1327 = vmatpush.msra.mxu0 0.0
      %1328 = vmatpush.msra.mxu0 0.0
      %1329 = vmatpush.msra.mxu0 0.0
      %1330 = vmatpush.msra.mxu0 0.0
      %1331 = vmatpush.msra.mxu0 0.0
      %1332 = vmatpush.msra.mxu0 0.0
      %1333 = vmatpush.msra.mxu0 0.0
      %1334 = vmatpush.msra.mxu0 0.0
      %1335 = vmatpush.msra.mxu0 0.0
      %1336 = vmatpush.msra.mxu0 0.0
      %1337 = vmatpush.msra.mxu0 0.0
      %1338 = vmatpush.msra.mxu0 0.0
      %1339 = vmatpush.msra.mxu0 0.0
      %1340 = vmatpush.msra.mxu0 0.0
      %1341 = vmatpush.msra.mxu0 0.0
      %1342 = vmatpush.msra.mxu0 %v1325
      %1343 = vmatmul.f32.gmra.mxu0 %v238
      %v1344 = vpop.f32.mrf.mxu0
      %v1345 = vadd.f32 0.0, %v1344
      %1346 = vmatmul.f32.gmra.mxu0 %v241
      %v1347 = vpop.f32.mrf.mxu0
      %v1348 = vadd.f32 0.0, %v1347
      %1349 = vmatmul.f32.gmra.mxu0 %v244
      %v1350 = vpop.f32.mrf.mxu0
      %v1351 = vadd.f32 0.0, %v1350
      %1352 = vmatmul.f32.gmra.mxu0 %v247
      %v1353 = vpop.f32.mrf.mxu0
      %v1354 = vadd.f32 0.0, %v1353
      %1355 = vmatmul.f32.gmra.mxu0 %v250
      %v1356 = vpop.f32.mrf.mxu0
      %v1357 = vadd.f32 0.0, %v1356
      %1358 = vmatmul.f32.gmra.mxu0 %v253
      %v1359 = vpop.f32.mrf.mxu0
      %v1360 = vadd.f32 0.0, %v1359
      %1361 = vmatmul.f32.gmra.mxu0 %v256
      %v1362 = vpop.f32.mrf.mxu0
      %v1363 = vadd.f32 0.0, %v1362
      %1364 = vmatmul.f32.gmra.mxu0 %v259
      %v1365 = vpop.f32.mrf.mxu0
      %v1366 = vadd.f32 0.0, %v1365
      %1367 = vmatmul.f32.gmra.mxu0 %v262
      %v1368 = vpop.f32.mrf.mxu0
      %v1369 = vadd.f32 0.0, %v1368
      %1370 = vmatmul.f32.gmra.mxu0 %v265
      %v1371 = vpop.f32.mrf.mxu0
      %v1372 = vadd.f32 0.0, %v1371
      %1373 = vmatmul.f32.gmra.mxu0 %v268
      %v1374 = vpop.f32.mrf.mxu0
      %v1375 = vadd.f32 0.0, %v1374
      %1376 = vmatmul.f32.gmra.mxu0 %v271
      %v1377 = vpop.f32.mrf.mxu0
      %v1378 = vadd.f32 0.0, %v1377
      %1379 = vmatmul.f32.gmra.mxu0 %v274
      %v1380 = vpop.f32.mrf.mxu0
      %v1381 = vadd.f32 0.0, %v1380
      %1382 = vmatmul.f32.gmra.mxu0 %v277
      %v1383 = vpop.f32.mrf.mxu0
      %v1384 = vadd.f32 0.0, %v1383
      %1385 = vmatmul.f32.gmra.mxu0 %v280
      %v1386 = vpop.f32.mrf.mxu0
      %v1387 = vadd.f32 0.0, %v1386
      %1388 = vmatmul.f32.gmra.mxu0 %v283
      %v1389 = vpop.f32.mrf.mxu0
      %v1390 = vadd.f32 0.0, %v1389
      %1391 = vmatmul.f32.gmra.mxu0 %v286
      %v1392 = vpop.f32.mrf.mxu0
      %v1393 = vadd.f32 0.0, %v1392
      %1394 = vmatmul.f32.gmra.mxu0 %v289
      %v1395 = vpop.f32.mrf.mxu0
      %v1396 = vadd.f32 0.0, %v1395
      %1397 = vmatmul.f32.gmra.mxu0 %v292
      %v1398 = vpop.f32.mrf.mxu0
      %v1399 = vadd.f32 0.0, %v1398
      %1400 = vmatmul.f32.gmra.mxu0 %v295
      %v1401 = vpop.f32.mrf.mxu0
      %v1402 = vadd.f32 0.0, %v1401
      %1403 = vmatmul.f32.gmra.mxu0 %v298
      %v1404 = vpop.f32.mrf.mxu0
      %v1405 = vadd.f32 0.0, %v1404
      %1406 = vmatmul.f32.gmra.mxu0 %v301
      %v1407 = vpop.f32.mrf.mxu0
      %v1408 = vadd.f32 0.0, %v1407
      %1409 = vmatmul.f32.gmra.mxu0 %v304
      %v1410 = vpop.f32.mrf.mxu0
      %v1411 = vadd.f32 0.0, %v1410
      %1412 = vmatmul.f32.gmra.mxu0 %v307
      %v1413 = vpop.f32.mrf.mxu0
      %v1414 = vadd.f32 0.0, %v1413
      %1415 = vmatmul.f32.gmra.mxu0 %v310
      %v1416 = vpop.f32.mrf.mxu0
      %v1417 = vadd.f32 0.0, %v1416
      %1418 = vmatmul.f32.gmra.mxu0 %v313
      %v1419 = vpop.f32.mrf.mxu0
      %v1420 = vadd.f32 0.0, %v1419
      %1421 = vmatmul.f32.gmra.mxu0 %v316
      %v1422 = vpop.f32.mrf.mxu0
      %v1423 = vadd.f32 0.0, %v1422
      %1424 = vmatmul.f32.gmra.mxu0 %v319
      %v1425 = vpop.f32.mrf.mxu0
      %v1426 = vadd.f32 0.0, %v1425
      %1427 = vmatmul.f32.gmra.mxu0 %v322
      %v1428 = vpop.f32.mrf.mxu0
      %v1429 = vadd.f32 0.0, %v1428
      %1430 = vmatmul.f32.gmra.mxu0 %v325
      %v1431 = vpop.f32.mrf.mxu0
      %v1432 = vadd.f32 0.0, %v1431
      %1433 = vmatmul.f32.gmra.mxu0 %v328
      %v1434 = vpop.f32.mrf.mxu0
      %v1435 = vadd.f32 0.0, %v1434
      %1436 = vmatmul.f32.gmra.mxu0 %v331
      %v1437 = vpop.f32.mrf.mxu0
      %v1438 = vadd.f32 0.0, %v1437
      %1439 = vdwg.mxu0
      %s1440 = scalar_lea.vmem %s2, 32
      %v1441 = vld [vmem:[%s1440] sm:$0xff]
      %v1442 = vld [vmem:[%s1440 + $0x8] sm:$0xff]
      %v1444 = vsel %vm573, %v1441, 0
      %v1447 = vsel %vm573, %v1442, 0
      %1449 = vmatpush.msra.mxu0 0.0
      %1450 = vmatpush.msra.mxu0 0.0
      %1451 = vmatpush.msra.mxu0 0.0
      %1452 = vmatpush.msra.mxu0 0.0
      %1453 = vmatpush.msra.mxu0 0.0
      %1454 = vmatpush.msra.mxu0 0.0
      %1455 = vmatpush.msra.mxu0 0.0
      %1456 = vmatpush.msra.mxu0 0.0
      %1457 = vmatpush.msra.mxu0 0.0
      %1458 = vmatpush.msra.mxu0 0.0
      %1459 = vmatpush.msra.mxu0 0.0
      %1460 = vmatpush.msra.mxu0 0.0
      %1461 = vmatpush.msra.mxu0 0.0
      %1462 = vmatpush.msra.mxu0 0.0
      %1463 = vmatpush.msra.mxu0 %v1348
      %1464 = vmatpush.msra.mxu0 %v1345
      %1465 = vmatmul.f32.gmra.mxu0 %v1444
      %v1466 = vpop.f32.mrf.mxu0
      %v1467 = vadd.f32 0.0, %v1466
      %1468 = vmatmul.f32.gmra.mxu0 %v1447
      %v1469 = vpop.f32.mrf.mxu0
      %v1470 = vadd.f32 0.0, %v1469
      %1471 = vdwg.mxu0
      %1472 = vmatpush.msra.mxu0 0.0
      %1473 = vmatpush.msra.mxu0 0.0
      %1474 = vmatpush.msra.mxu0 0.0
      %1475 = vmatpush.msra.mxu0 0.0
      %1476 = vmatpush.msra.mxu0 0.0
      %1477 = vmatpush.msra.mxu0 0.0
      %1478 = vmatpush.msra.mxu0 0.0
      %1479 = vmatpush.msra.mxu0 0.0
      %1480 = vmatpush.msra.mxu0 0.0
      %1481 = vmatpush.msra.mxu0 0.0
      %1482 = vmatpush.msra.mxu0 0.0
      %1483 = vmatpush.msra.mxu0 0.0
      %1484 = vmatpush.msra.mxu0 0.0
      %1485 = vmatpush.msra.mxu0 0.0
      %1486 = vmatpush.msra.mxu0 %v1354
      %1487 = vmatpush.msra.mxu0 %v1351
      %1488 = vmatmul.f32.gmra.mxu0 %v1444
      %v1489 = vpop.f32.mrf.mxu0
      %v1490 = vadd.f32 0.0, %v1489
      %1491 = vmatmul.f32.gmra.mxu0 %v1447
      %v1492 = vpop.f32.mrf.mxu0
      %v1493 = vadd.f32 0.0, %v1492
      %1494 = vdwg.mxu0
      %1495 = vmatpush.msra.mxu0 0.0
      %1496 = vmatpush.msra.mxu0 0.0
      %1497 = vmatpush.msra.mxu0 0.0
      %1498 = vmatpush.msra.mxu0 0.0
      %1499 = vmatpush.msra.mxu0 0.0
      %1500 = vmatpush.msra.mxu0 0.0
      %1501 = vmatpush.msra.mxu0 0.0
      %1502 = vmatpush.msra.mxu0 0.0
      %1503 = vmatpush.msra.mxu0 0.0
      %1504 = vmatpush.msra.mxu0 0.0
      %1505 = vmatpush.msra.mxu0 0.0
      %1506 = vmatpush.msra.mxu0 0.0
      %1507 = vmatpush.msra.mxu0 0.0
      %1508 = vmatpush.msra.mxu0 0.0
      %1509 = vmatpush.msra.mxu0 %v1360
      %1510 = vmatpush.msra.mxu0 %v1357
      %1511 = vmatmul.f32.gmra.mxu0 %v1444
      %v1512 = vpop.f32.mrf.mxu0
      %v1513 = vadd.f32 0.0, %v1512
      %1514 = vmatmul.f32.gmra.mxu0 %v1447
      %v1515 = vpop.f32.mrf.mxu0
      %v1516 = vadd.f32 0.0, %v1515
      %1517 = vdwg.mxu0
      %1518 = vmatpush.msra.mxu0 0.0
      %1519 = vmatpush.msra.mxu0 0.0
      %1520 = vmatpush.msra.mxu0 0.0
      %1521 = vmatpush.msra.mxu0 0.0
      %1522 = vmatpush.msra.mxu0 0.0
      %1523 = vmatpush.msra.mxu0 0.0
      %1524 = vmatpush.msra.mxu0 0.0
      %1525 = vmatpush.msra.mxu0 0.0
      %1526 = vmatpush.msra.mxu0 0.0
      %1527 = vmatpush.msra.mxu0 0.0
      %1528 = vmatpush.msra.mxu0 0.0
      %1529 = vmatpush.msra.mxu0 0.0
      %1530 = vmatpush.msra.mxu0 0.0
      %1531 = vmatpush.msra.mxu0 0.0
      %1532 = vmatpush.msra.mxu0 %v1366
      %1533 = vmatpush.msra.mxu0 %v1363
      %1534 = vmatmul.f32.gmra.mxu0 %v1444
      %v1535 = vpop.f32.mrf.mxu0
      %v1536 = vadd.f32 0.0, %v1535
      %1537 = vmatmul.f32.gmra.mxu0 %v1447
      %v1538 = vpop.f32.mrf.mxu0
      %v1539 = vadd.f32 0.0, %v1538
      %1540 = vdwg.mxu0
      %1541 = vmatpush.msra.mxu0 0.0
      %1542 = vmatpush.msra.mxu0 0.0
      %1543 = vmatpush.msra.mxu0 0.0
      %1544 = vmatpush.msra.mxu0 0.0
      %1545 = vmatpush.msra.mxu0 0.0
      %1546 = vmatpush.msra.mxu0 0.0
      %1547 = vmatpush.msra.mxu0 0.0
      %1548 = vmatpush.msra.mxu0 0.0
      %1549 = vmatpush.msra.mxu0 0.0
      %1550 = vmatpush.msra.mxu0 0.0
      %1551 = vmatpush.msra.mxu0 0.0
      %1552 = vmatpush.msra.mxu0 0.0
      %1553 = vmatpush.msra.mxu0 0.0
      %1554 = vmatpush.msra.mxu0 0.0
      %1555 = vmatpush.msra.mxu0 %v1372
      %1556 = vmatpush.msra.mxu0 %v1369
      %1557 = vmatmul.f32.gmra.mxu0 %v1444
      %v1558 = vpop.f32.mrf.mxu0
      %v1559 = vadd.f32 0.0, %v1558
      %1560 = vmatmul.f32.gmra.mxu0 %v1447
      %v1561 = vpop.f32.mrf.mxu0
      %v1562 = vadd.f32 0.0, %v1561
      %1563 = vdwg.mxu0
      %1564 = vmatpush.msra.mxu0 0.0
      %1565 = vmatpush.msra.mxu0 0.0
      %1566 = vmatpush.msra.mxu0 0.0
      %1567 = vmatpush.msra.mxu0 0.0
      %1568 = vmatpush.msra.mxu0 0.0
      %1569 = vmatpush.msra.mxu0 0.0
      %1570 = vmatpush.msra.mxu0 0.0
      %1571 = vmatpush.msra.mxu0 0.0
      %1572 = vmatpush.msra.mxu0 0.0
      %1573 = vmatpush.msra.mxu0 0.0
      %1574 = vmatpush.msra.mxu0 0.0
      %1575 = vmatpush.msra.mxu0 0.0
      %1576 = vmatpush.msra.mxu0 0.0
      %1577 = vmatpush.msra.mxu0 0.0
      %1578 = vmatpush.msra.mxu0 %v1378
      %1579 = vmatpush.msra.mxu0 %v1375
      %1580 = vmatmul.f32.gmra.mxu0 %v1444
      %v1581 = vpop.f32.mrf.mxu0
      %v1582 = vadd.f32 0.0, %v1581
      %1583 = vmatmul.f32.gmra.mxu0 %v1447
      %v1584 = vpop.f32.mrf.mxu0
      %v1585 = vadd.f32 0.0, %v1584
      %1586 = vdwg.mxu0
      %1587 = vmatpush.msra.mxu0 0.0
      %1588 = vmatpush.msra.mxu0 0.0
      %1589 = vmatpush.msra.mxu0 0.0
      %1590 = vmatpush.msra.mxu0 0.0
      %1591 = vmatpush.msra.mxu0 0.0
      %1592 = vmatpush.msra.mxu0 0.0
      %1593 = vmatpush.msra.mxu0 0.0
      %1594 = vmatpush.msra.mxu0 0.0
      %1595 = vmatpush.msra.mxu0 0.0
      %1596 = vmatpush.msra.mxu0 0.0
      %1597 = vmatpush.msra.mxu0 0.0
      %1598 = vmatpush.msra.mxu0 0.0
      %1599 = vmatpush.msra.mxu0 0.0
      %1600 = vmatpush.msra.mxu0 0.0
      %1601 = vmatpush.msra.mxu0 %v1384
      %1602 = vmatpush.msra.mxu0 %v1381
      %1603 = vmatmul.f32.gmra.mxu0 %v1444
      %v1604 = vpop.f32.mrf.mxu0
      %v1605 = vadd.f32 0.0, %v1604
      %1606 = vmatmul.f32.gmra.mxu0 %v1447
      %v1607 = vpop.f32.mrf.mxu0
      %v1608 = vadd.f32 0.0, %v1607
      %1609 = vdwg.mxu0
      %1610 = vmatpush.msra.mxu0 0.0
      %1611 = vmatpush.msra.mxu0 0.0
      %1612 = vmatpush.msra.mxu0 0.0
      %1613 = vmatpush.msra.mxu0 0.0
      %1614 = vmatpush.msra.mxu0 0.0
      %1615 = vmatpush.msra.mxu0 0.0
      %1616 = vmatpush.msra.mxu0 0.0
      %1617 = vmatpush.msra.mxu0 0.0
      %1618 = vmatpush.msra.mxu0 0.0
      %1619 = vmatpush.msra.mxu0 0.0
      %1620 = vmatpush.msra.mxu0 0.0
      %1621 = vmatpush.msra.mxu0 0.0
      %1622 = vmatpush.msra.mxu0 0.0
      %1623 = vmatpush.msra.mxu0 0.0
      %1624 = vmatpush.msra.mxu0 %v1390
      %1625 = vmatpush.msra.mxu0 %v1387
      %1626 = vmatmul.f32.gmra.mxu0 %v1444
      %v1627 = vpop.f32.mrf.mxu0
      %v1628 = vadd.f32 0.0, %v1627
      %1629 = vmatmul.f32.gmra.mxu0 %v1447
      %v1630 = vpop.f32.mrf.mxu0
      %v1631 = vadd.f32 0.0, %v1630
      %1632 = vdwg.mxu0
      %1633 = vmatpush.msra.mxu0 0.0
      %1634 = vmatpush.msra.mxu0 0.0
      %1635 = vmatpush.msra.mxu0 0.0
      %1636 = vmatpush.msra.mxu0 0.0
      %1637 = vmatpush.msra.mxu0 0.0
      %1638 = vmatpush.msra.mxu0 0.0
      %1639 = vmatpush.msra.mxu0 0.0
      %1640 = vmatpush.msra.mxu0 0.0
      %1641 = vmatpush.msra.mxu0 0.0
      %1642 = vmatpush.msra.mxu0 0.0
      %1643 = vmatpush.msra.mxu0 0.0
      %1644 = vmatpush.msra.mxu0 0.0
      %1645 = vmatpush.msra.mxu0 0.0
      %1646 = vmatpush.msra.mxu0 0.0
      %1647 = vmatpush.msra.mxu0 %v1396
      %1648 = vmatpush.msra.mxu0 %v1393
      %1649 = vmatmul.f32.gmra.mxu0 %v1444
      %v1650 = vpop.f32.mrf.mxu0
      %v1651 = vadd.f32 0.0, %v1650
      %1652 = vmatmul.f32.gmra.mxu0 %v1447
      %v1653 = vpop.f32.mrf.mxu0
      %v1654 = vadd.f32 0.0, %v1653
      %1655 = vdwg.mxu0
      %1656 = vmatpush.msra.mxu0 0.0
      %1657 = vmatpush.msra.mxu0 0.0
      %1658 = vmatpush.msra.mxu0 0.0
      %1659 = vmatpush.msra.mxu0 0.0
      %1660 = vmatpush.msra.mxu0 0.0
      %1661 = vmatpush.msra.mxu0 0.0
      %1662 = vmatpush.msra.mxu0 0.0
      %1663 = vmatpush.msra.mxu0 0.0
      %1664 = vmatpush.msra.mxu0 0.0
      %1665 = vmatpush.msra.mxu0 0.0
      %1666 = vmatpush.msra.mxu0 0.0
      %1667 = vmatpush.msra.mxu0 0.0
      %1668 = vmatpush.msra.mxu0 0.0
      %1669 = vmatpush.msra.mxu0 0.0
      %1670 = vmatpush.msra.mxu0 %v1402
      %1671 = vmatpush.msra.mxu0 %v1399
      %1672 = vmatmul.f32.gmra.mxu0 %v1444
      %v1673 = vpop.f32.mrf.mxu0
      %v1674 = vadd.f32 0.0, %v1673
      %1675 = vmatmul.f32.gmra.mxu0 %v1447
      %v1676 = vpop.f32.mrf.mxu0
      %v1677 = vadd.f32 0.0, %v1676
      %1678 = vdwg.mxu0
      %1679 = vmatpush.msra.mxu0 0.0
      %1680 = vmatpush.msra.mxu0 0.0
      %1681 = vmatpush.msra.mxu0 0.0
      %1682 = vmatpush.msra.mxu0 0.0
      %1683 = vmatpush.msra.mxu0 0.0
      %1684 = vmatpush.msra.mxu0 0.0
      %1685 = vmatpush.msra.mxu0 0.0
      %1686 = vmatpush.msra.mxu0 0.0
      %1687 = vmatpush.msra.mxu0 0.0
      %1688 = vmatpush.msra.mxu0 0.0
      %1689 = vmatpush.msra.mxu0 0.0
      %1690 = vmatpush.msra.mxu0 0.0
      %1691 = vmatpush.msra.mxu0 0.0
      %1692 = vmatpush.msra.mxu0 0.0
      %1693 = vmatpush.msra.mxu0 %v1408
      %1694 = vmatpush.msra.mxu0 %v1405
      %1695 = vmatmul.f32.gmra.mxu0 %v1444
      %v1696 = vpop.f32.mrf.mxu0
      %v1697 = vadd.f32 0.0, %v1696
      %1698 = vmatmul.f32.gmra.mxu0 %v1447
      %v1699 = vpop.f32.mrf.mxu0
      %v1700 = vadd.f32 0.0, %v1699
      %1701 = vdwg.mxu0
      %1702 = vmatpush.msra.mxu0 0.0
      %1703 = vmatpush.msra.mxu0 0.0
      %1704 = vmatpush.msra.mxu0 0.0
      %1705 = vmatpush.msra.mxu0 0.0
      %1706 = vmatpush.msra.mxu0 0.0
      %1707 = vmatpush.msra.mxu0 0.0
      %1708 = vmatpush.msra.mxu0 0.0
      %1709 = vmatpush.msra.mxu0 0.0
      %1710 = vmatpush.msra.mxu0 0.0
      %1711 = vmatpush.msra.mxu0 0.0
      %1712 = vmatpush.msra.mxu0 0.0
      %1713 = vmatpush.msra.mxu0 0.0
      %1714 = vmatpush.msra.mxu0 0.0
      %1715 = vmatpush.msra.mxu0 0.0
      %1716 = vmatpush.msra.mxu0 %v1414
      %1717 = vmatpush.msra.mxu0 %v1411
      %1718 = vmatmul.f32.gmra.mxu0 %v1444
      %v1719 = vpop.f32.mrf.mxu0
      %v1720 = vadd.f32 0.0, %v1719
      %1721 = vmatmul.f32.gmra.mxu0 %v1447
      %v1722 = vpop.f32.mrf.mxu0
      %v1723 = vadd.f32 0.0, %v1722
      %1724 = vdwg.mxu0
      %1725 = vmatpush.msra.mxu0 0.0
      %1726 = vmatpush.msra.mxu0 0.0
      %1727 = vmatpush.msra.mxu0 0.0
      %1728 = vmatpush.msra.mxu0 0.0
      %1729 = vmatpush.msra.mxu0 0.0
      %1730 = vmatpush.msra.mxu0 0.0
      %1731 = vmatpush.msra.mxu0 0.0
      %1732 = vmatpush.msra.mxu0 0.0
      %1733 = vmatpush.msra.mxu0 0.0
      %1734 = vmatpush.msra.mxu0 0.0
      %1735 = vmatpush.msra.mxu0 0.0
      %1736 = vmatpush.msra.mxu0 0.0
      %1737 = vmatpush.msra.mxu0 0.0
      %1738 = vmatpush.msra.mxu0 0.0
      %1739 = vmatpush.msra.mxu0 %v1420
      %1740 = vmatpush.msra.mxu0 %v1417
      %1741 = vmatmul.f32.gmra.mxu0 %v1444
      %v1742 = vpop.f32.mrf.mxu0
      %v1743 = vadd.f32 0.0, %v1742
      %1744 = vmatmul.f32.gmra.mxu0 %v1447
      %v1745 = vpop.f32.mrf.mxu0
      %v1746 = vadd.f32 0.0, %v1745
      %1747 = vdwg.mxu0
      %1748 = vmatpush.msra.mxu0 0.0
      %1749 = vmatpush.msra.mxu0 0.0
      %1750 = vmatpush.msra.mxu0 0.0
      %1751 = vmatpush.msra.mxu0 0.0
      %1752 = vmatpush.msra.mxu0 0.0
      %1753 = vmatpush.msra.mxu0 0.0
      %1754 = vmatpush.msra.mxu0 0.0
      %1755 = vmatpush.msra.mxu0 0.0
      %1756 = vmatpush.msra.mxu0 0.0
      %1757 = vmatpush.msra.mxu0 0.0
      %1758 = vmatpush.msra.mxu0 0.0
      %1759 = vmatpush.msra.mxu0 0.0
      %1760 = vmatpush.msra.mxu0 0.0
      %1761 = vmatpush.msra.mxu0 0.0
      %1762 = vmatpush.msra.mxu0 %v1426
      %1763 = vmatpush.msra.mxu0 %v1423
      %1764 = vmatmul.f32.gmra.mxu0 %v1444
      %v1765 = vpop.f32.mrf.mxu0
      %v1766 = vadd.f32 0.0, %v1765
      %1767 = vmatmul.f32.gmra.mxu0 %v1447
      %v1768 = vpop.f32.mrf.mxu0
      %v1769 = vadd.f32 0.0, %v1768
      %1770 = vdwg.mxu0
      %1771 = vmatpush.msra.mxu0 0.0
      %1772 = vmatpush.msra.mxu0 0.0
      %1773 = vmatpush.msra.mxu0 0.0
      %1774 = vmatpush.msra.mxu0 0.0
      %1775 = vmatpush.msra.mxu0 0.0
      %1776 = vmatpush.msra.mxu0 0.0
      %1777 = vmatpush.msra.mxu0 0.0
      %1778 = vmatpush.msra.mxu0 0.0
      %1779 = vmatpush.msra.mxu0 0.0
      %1780 = vmatpush.msra.mxu0 0.0
      %1781 = vmatpush.msra.mxu0 0.0
      %1782 = vmatpush.msra.mxu0 0.0
      %1783 = vmatpush.msra.mxu0 0.0
      %1784 = vmatpush.msra.mxu0 0.0
      %1785 = vmatpush.msra.mxu0 %v1432
      %1786 = vmatpush.msra.mxu0 %v1429
      %1787 = vmatmul.f32.gmra.mxu0 %v1444
      %v1788 = vpop.f32.mrf.mxu0
      %v1789 = vadd.f32 0.0, %v1788
      %1790 = vmatmul.f32.gmra.mxu0 %v1447
      %v1791 = vpop.f32.mrf.mxu0
      %v1792 = vadd.f32 0.0, %v1791
      %1793 = vdwg.mxu0
      %1794 = vmatpush.msra.mxu0 0.0
      %1795 = vmatpush.msra.mxu0 0.0
      %1796 = vmatpush.msra.mxu0 0.0
      %1797 = vmatpush.msra.mxu0 0.0
      %1798 = vmatpush.msra.mxu0 0.0
      %1799 = vmatpush.msra.mxu0 0.0
      %1800 = vmatpush.msra.mxu0 0.0
      %1801 = vmatpush.msra.mxu0 0.0
      %1802 = vmatpush.msra.mxu0 0.0
      %1803 = vmatpush.msra.mxu0 0.0
      %1804 = vmatpush.msra.mxu0 0.0
      %1805 = vmatpush.msra.mxu0 0.0
      %1806 = vmatpush.msra.mxu0 0.0
      %1807 = vmatpush.msra.mxu0 0.0
      %1808 = vmatpush.msra.mxu0 %v1438
      %1809 = vmatpush.msra.mxu0 %v1435
      %1810 = vmatmul.f32.gmra.mxu0 %v1444
      %v1811 = vpop.f32.mrf.mxu0
      %v1812 = vadd.f32 0.0, %v1811
      %1813 = vmatmul.f32.gmra.mxu0 %v1447
      %v1814 = vpop.f32.mrf.mxu0
      %v1815 = vadd.f32 0.0, %v1814
      %1816 = vdwg.mxu0
      %v1817 = vadd.f32 %v972, %v1467
      %v1818 = vadd.f32 %v975, %v1470
      %v1819 = vadd.f32 %v995, %v1490
      %v1820 = vadd.f32 %v998, %v1493
      %v1821 = vadd.f32 %v1018, %v1513
      %v1822 = vadd.f32 %v1021, %v1516
      %v1823 = vadd.f32 %v1041, %v1536
      %v1824 = vadd.f32 %v1044, %v1539
      %v1825 = vadd.f32 %v1064, %v1559
      %v1826 = vadd.f32 %v1067, %v1562
      %v1827 = vadd.f32 %v1087, %v1582
      %v1828 = vadd.f32 %v1090, %v1585
      %v1829 = vadd.f32 %v1110, %v1605
      %v1830 = vadd.f32 %v1113, %v1608
      %v1831 = vadd.f32 %v1133, %v1628
      %v1832 = vadd.f32 %v1136, %v1631
      %v1833 = vadd.f32 %v1156, %v1651
      %v1834 = vadd.f32 %v1159, %v1654
      %v1835 = vadd.f32 %v1179, %v1674
      %v1836 = vadd.f32 %v1182, %v1677
      %v1837 = vadd.f32 %v1202, %v1697
      %v1838 = vadd.f32 %v1205, %v1700
      %v1839 = vadd.f32 %v1225, %v1720
      %v1840 = vadd.f32 %v1228, %v1723
      %v1841 = vadd.f32 %v1248, %v1743
      %v1842 = vadd.f32 %v1251, %v1746
      %v1843 = vadd.f32 %v1271, %v1766
      %v1844 = vadd.f32 %v1274, %v1769
      %v1845 = vadd.f32 %v1294, %v1789
      %v1846 = vadd.f32 %v1297, %v1792
      %v1847 = vadd.f32 %v1317, %v1812
      %v1848 = vadd.f32 %v1320, %v1815
      %v1849 = vld [vmem:[%s3] sm:$0xff]
      %v1850 = vld [vmem:[%s3 + $0x8] sm:$0xff]
      %v1851 = vadd.f32 %v1817, %v1849
      %v1852 = vadd.f32 %v1818, %v1850
      %v1853 = vadd.f32 %v1819, %v1849
      %v1854 = vadd.f32 %v1820, %v1850
      %v1855 = vadd.f32 %v1821, %v1849
      %v1856 = vadd.f32 %v1822, %v1850
      %v1857 = vadd.f32 %v1823, %v1849
      %v1858 = vadd.f32 %v1824, %v1850
      %v1859 = vadd.f32 %v1825, %v1849
      %v1860 = vadd.f32 %v1826, %v1850
      %v1861 = vadd.f32 %v1827, %v1849
      %v1862 = vadd.f32 %v1828, %v1850
      %v1863 = vadd.f32 %v1829, %v1849
      %v1864 = vadd.f32 %v1830, %v1850
      %v1865 = vadd.f32 %v1831, %v1849
      %v1866 = vadd.f32 %v1832, %v1850
      %v1867 = vadd.f32 %v1833, %v1849
      %v1868 = vadd.f32 %v1834, %v1850
      %v1869 = vadd.f32 %v1835, %v1849
      %v1870 = vadd.f32 %v1836, %v1850
      %v1871 = vadd.f32 %v1837, %v1849
      %v1872 = vadd.f32 %v1838, %v1850
      %v1873 = vadd.f32 %v1839, %v1849
      %v1874 = vadd.f32 %v1840, %v1850
      %v1875 = vadd.f32 %v1841, %v1849
      %v1876 = vadd.f32 %v1842, %v1850
      %v1877 = vadd.f32 %v1843, %v1849
      %v1878 = vadd.f32 %v1844, %v1850
      %v1879 = vadd.f32 %v1845, %v1849
      %v1880 = vadd.f32 %v1846, %v1850
      %v1881 = vadd.f32 %v1847, %v1849
      %v1882 = vadd.f32 %v1848, %v1850
      %vm1883 = vcmask 64512
      %1884 = vst.msk [vmem:[%s201] sm:$0xff] %vm1883, %v1851
      %1885 = vst.msk [vmem:[%s201 + $0x8] sm:$0xff] %vm1883, %v1852
      %1886 = vst.msk [vmem:[%s201 + $0x10] sm:$0xff] %vm1883, %v1853
      %1887 = vst.msk [vmem:[%s201 + $0x18] sm:$0xff] %vm1883, %v1854
      %1888 = vst.msk [vmem:[%s201 + $0x20] sm:$0xff] %vm1883, %v1855
      %1889 = vst.msk [vmem:[%s201 + $0x28] sm:$0xff] %vm1883, %v1856
      %1890 = vst.msk [vmem:[%s201 + $0x30] sm:$0xff] %vm1883, %v1857
      %1891 = vst.msk [vmem:[%s201 + $0x38] sm:$0xff] %vm1883, %v1858
      %1892 = vst.msk [vmem:[%s201 + $0x40] sm:$0xff] %vm1883, %v1859
      %1893 = vst.msk [vmem:[%s201 + $0x48] sm:$0xff] %vm1883, %v1860
      %1894 = vst.msk [vmem:[%s201 + $0x50] sm:$0xff] %vm1883, %v1861
      %1895 = vst.msk [vmem:[%s201 + $0x58] sm:$0xff] %vm1883, %v1862
      %1896 = vst.msk [vmem:[%s201 + $0x60] sm:$0xff] %vm1883, %v1863
      %1897 = vst.msk [vmem:[%s201 + $0x68] sm:$0xff] %vm1883, %v1864
      %1898 = vst.msk [vmem:[%s201 + $0x70] sm:$0xff] %vm1883, %v1865
      %1899 = vst.msk [vmem:[%s201 + $0x78] sm:$0xff] %vm1883, %v1866
      %1900 = vst.msk [vmem:[%s201 + $0x80] sm:$0xff] %vm1883, %v1867
      %1901 = vst.msk [vmem:[%s201 + $0x88] sm:$0xff] %vm1883, %v1868
      %1902 = vst.msk [vmem:[%s201 + $0x90] sm:$0xff] %vm1883, %v1869
      %1903 = vst.msk [vmem:[%s201 + $0x98] sm:$0xff] %vm1883, %v1870
      %1904 = vst.msk [vmem:[%s201 + $0xa0] sm:$0xff] %vm1883, %v1871
      %1905 = vst.msk [vmem:[%s201 + $0xa8] sm:$0xff] %vm1883, %v1872
      %1906 = vst.msk [vmem:[%s201 + $0xb0] sm:$0xff] %vm1883, %v1873
      %1907 = vst.msk [vmem:[%s201 + $0xb8] sm:$0xff] %vm1883, %v1874
      %1908 = vst.msk [vmem:[%s201 + $0xc0] sm:$0xff] %vm1883, %v1875
      %1909 = vst.msk [vmem:[%s201 + $0xc8] sm:$0xff] %vm1883, %v1876
      %1910 = vst.msk [vmem:[%s201 + $0xd0] sm:$0xff] %vm1883, %v1877
      %1911 = vst.msk [vmem:[%s201 + $0xd8] sm:$0xff] %vm1883, %v1878
      %1912 = vst.msk [vmem:[%s201 + $0xe0] sm:$0xff] %vm1883, %v1879
      %1913 = vst.msk [vmem:[%s201 + $0xe8] sm:$0xff] %vm1883, %v1880
      %1914 = vst.msk [vmem:[%s201 + $0xf0] sm:$0xff] %vm1883, %v1881
      %1915 = vst.msk [vmem:[%s201 + $0xf8] sm:$0xff] %vm1883, %v1882
      %s1916 = smul.u32 16, %s15
      %p1917 = scmp.lt.s32.totalorder %s1916, 31
      %s1918 = scalar_select %p1917, %s1916, 31
      %s1919 = smul.addr %s1918, 2
      %s1920 = smul.addr %s1919, 8
      %s1921 = scalar_lea.vmem %s4, %s1920
      // Predicated region
      $region37: #{tpu_custom_call.1} parent=35 // pred_check
        %p1922 = pneg %p122
      $region38: #{tpu_custom_call.1} parent=35 // pred_check_branch
        %1924 = sbr.rel (%p1922) target = $region40
      $region39: #{tpu_custom_call.1} parent=35 // pred_region
        %s1925 = smul.u32 16, %s15
      $region40: #{tpu_custom_call.1} parent=35 // pred_fallthru
        _
    $region36: #{tpu_custom_call.1} parent=5 // pred_fallthru
      _
    %p1926 = scmp.le.s32.totalorder 2, %s10
    // Predicated region
    $region41: #{tpu_custom_call.1} parent=5 // pred_check
      %p1927 = pneg %p1926
    $region42: #{tpu_custom_call.1} parent=5 // pred_check_branch
      %1929 = sbr.rel (%p1927) target = $region44
    $region43: #{tpu_custom_call.1} parent=5 // pred_region
      %s1930 = ssub.s32 %s10, 2
      // Predicated region
      $region45: #{tpu_custom_call.1} parent=43 // pred_check
        %p1931 = pneg %p128
      $region46: #{tpu_custom_call.1} parent=43 // pred_check_branch
        %1933 = sbr.rel (%p1931) target = $region48
      $region47: #{tpu_custom_call.1} parent=43 // pred_region
        %s1934 = smul.u32 16, %s16
        %p1935 = scmp.lt.s32.totalorder %s1934, 31
        %s1936 = scalar_select %p1935, %s1934, 31
        %s1937 = smul.addr %s1936, 2
        %s1938 = smul.addr %s1937, 8
        %s1939 = scalar_lea.vmem %s4, %s1938
      $region48: #{tpu_custom_call.1} parent=43 // pred_fallthru
        _
    $region44: #{tpu_custom_call.1} parent=5 // pred_fallthru
      _
  $region6: #{tpu_custom_call.1} parent=0 // loop_footer
    %s14 = sadd.s32 1, %s10
  $region7: #{tpu_custom_call.1} parent=0 // loop_footer_branch
    %9 = sbr.rel target = $region3
  $region8: #{tpu_custom_call.1} parent=0 // loop_exit
    _

</llo_original>
